<compile_context>
chip_gen: v7x
topology: tpu7x:2x2x1
jax: 0.10.0
libtpu: 0.0.40
codegen_flags: <defaults>
</compile_context>

<pallas_src>
import functools

import jax
import jax.numpy as jnp
from jax.experimental import pallas as pl
from jax.experimental.pallas import tpu as pltpu

_BN_EPS = 1e-5
_SUBLANE = 8
_MAX_TILE_ROWS = 4096            # plenty to amortize the ~0.35 us per-grid-step overhead
_FUSED_VMEM_BUDGET = 24 << 20    # conservative for v7x (64 MiB VMEM / TC, 32 MiB default scoped)
_TILE_VMEM_BUDGET = 16 << 20     # double-buffered tile working set per pass
_VMEM_LIMIT_CAP = 48 << 20       # stays below v7x's 64 MiB physical VMEM


def _round_up(a: int, b: int) -> int:
    return (a + b - 1) // b * b


def _compiler_params(need_bytes: int, dims):
    # Explicit scoped-VMEM limit: v5e's default is only 16 MiB; give 1.5x the estimated
    # working set (+2 MiB headroom) but never more than is safe on v7x.
    limit = int(min(max(need_bytes + need_bytes // 2 + (2 << 20), 16 << 20), _VMEM_LIMIT_CAP))
    return pltpu.CompilerParams(dimension_semantics=dims, vmem_limit_bytes=limit)


# --------------------------------------------------------------------------------------
# Fused single-pass kernel: matmul into a VMEM-resident y + finalize BN on the last step.
# --------------------------------------------------------------------------------------
def _fused_kernel(x_ref, wt_ref, g_ref, b_ref, o_ref, sum8_ref, *, n_rows, n_pad):
    i = pl.program_id(0)
    tile_rows = x_ref.shape[0]
    out_dim = o_ref.shape[-1]
    n_tiles = n_pad // tile_rows
    inv_n = 1.0 / n_rows

    # Per step: MXU matmul (f32 accumulation), store the tile into the resident output.
    y = jnp.dot(x_ref[...], wt_ref[...], preferred_element_type=jnp.float32)
    row0 = pl.multiple_of(i * tile_rows, _SUBLANE)
    o_ref[pl.ds(row0, tile_rows), :] = y.astype(o_ref.dtype)

    # Per step: per-sublane partial sums — pure VPU adds, keeps the XLU/extended slot
    # free for the MXU pushes (no full cross-sublane reduce per step).
    @pl.when(i == 0)
    def _():
        sum8_ref[...] = jnp.zeros_like(sum8_ref)

    sum8_ref[...] += jnp.sum(
        y.reshape(tile_rows // _SUBLANE, _SUBLANE, out_dim), axis=0)

    # Finalize on the last grid step: batch statistics + in-place normalization of the
    # VMEM-resident y (no HBM round trip, single kernel launch).
    @pl.when(i == n_tiles - 1)
    def _():
        mean = jnp.sum(sum8_ref[...], axis=0, keepdims=True) * inv_n        # (1, out)

        # Numerically robust two-pass variance (avoids E[y^2] - E[y]^2 cancellation).
        def css_step(c, acc):
            r0 = pl.multiple_of(c * tile_rows, _SUBLANE)
            d = o_ref[pl.ds(r0, tile_rows), :].astype(jnp.float32) - mean
            return acc + jnp.sum(d * d, axis=0, keepdims=True)

        css = jax.lax.fori_loop(0, n_tiles, css_step,
                                jnp.zeros((1, out_dim), jnp.float32))
        # Zero-padded rows each contribute exactly mean**2; remove them.
        css = css - float(n_pad - n_rows) * (mean * mean)
        var = css * inv_n
        scale = g_ref[...] * jax.lax.rsqrt(var + _BN_EPS)
        shift = b_ref[...] - mean * scale

        def apply_step(c, carry):
            r0 = pl.multiple_of(c * tile_rows, _SUBLANE)
            yc = o_ref[pl.ds(r0, tile_rows), :].astype(jnp.float32)
            o_ref[pl.ds(r0, tile_rows), :] = (yc * scale + shift).astype(o_ref.dtype)
            return carry

        jax.lax.fori_loop(0, n_tiles, apply_step, 0)


# --------------------------------------------------------------------------------------
# Two-pass fallback (large batch): pass 1 = matmul + per-core partial stats.
# --------------------------------------------------------------------------------------
def _linear_stats_kernel(x_ref, wt_ref, y_ref, sum_ref, ssq_ref):
    k = pl.program_id(1)          # "arbitrary" reduction axis; axis 0 is the core axis

    y = jnp.dot(x_ref[...], wt_ref[...], preferred_element_type=jnp.float32)
    y_ref[...] = y.astype(y_ref.dtype)        # bf16 intermediate halves y's HBM traffic

    @pl.when(k == 0)
    def _():
        sum_ref[...] = jnp.zeros_like(sum_ref)
        ssq_ref[...] = jnp.zeros_like(ssq_ref)

    # Per-sublane partial accumulation into the resident (1, 8, out) per-core blocks:
    # VPU-only adds, statistics taken from the f32 MXU accumulator (before the bf16 cast).
    y3 = y.reshape(y.shape[0] // _SUBLANE, _SUBLANE, y.shape[1])
    sum_ref[...] += jnp.sum(y3, axis=0)[None]
    ssq_ref[...] += jnp.sum(y3 * y3, axis=0)[None]


# Pass 2: scale/shift are hoisted into the wrapper, so this is a single FMA per tile.
def _bn_apply_kernel(y_ref, scale_ref, shift_ref, o_ref):
    o_ref[...] = (y_ref[...].astype(jnp.float32) * scale_ref[...]
                  + shift_ref[...]).astype(o_ref.dtype)


# --------------------------------------------------------------------------------------
# Wrapper
# --------------------------------------------------------------------------------------
def single_layer_feature_extractor(x, weight, bias, gamma, beta, *,
                                   force_two_pass=False,
                                   y_dtype=jnp.bfloat16):
    """Forward pass of SingleLayerFeatureExtractor (Linear -> training-mode BatchNorm1d).

    x:      (N, feature_dim)
    weight: (output_dim, feature_dim)   -- PyTorch nn.Linear layout
    bias:   (output_dim,)               -- mathematically cancelled by BN mean subtraction
    gamma, beta: (output_dim,)          -- BatchNorm1d affine parameters
    returns (N, output_dim) in x.dtype
    """
    del bias  # exact no-op under training-mode BatchNorm
    # TODO(synk): reinstate the bias if an eval-mode (running-stats) BN path is ever added.

    n, feat = x.shape
    out_dim = weight.shape[0]
    out_dtype = x.dtype
    xsz = jnp.dtype(x.dtype).itemsize
    osz = jnp.dtype(out_dtype).itemsize

    # One-off weight transpose in the wrapper: the block is grid-invariant, so this
    # guarantees no per-step relayout inside the kernel.  Cast to the activation dtype so
    # bf16 activations get the native MXU rate on v6e/v7x.
    w_t = weight.T.astype(x.dtype)
    g2 = gamma.reshape(1, out_dim).astype(jnp.float32)
    b2 = beta.reshape(1, out_dim).astype(jnp.float32)

    # ---------------- tile planning ----------------
    # Keep the double-buffered x tile under ~8 MiB; prefer multiples of 256 rows (full MXU
    # height on v6e/v7x), never below 256 unless the whole batch is smaller.
    # TODO(synk): no K-dim tiling — feature_dim is assumed to fit VMEM next to a batch tile.
    max_rows = max(_SUBLANE, ((8 << 20) // (2 * feat * xsz)) // _SUBLANE * _SUBLANE)
    n8 = _round_up(max(n, 1), _SUBLANE)
    if n8 <= max_rows:
        tn_f = n8
    else:
        tn_f = max(256, min(_MAX_TILE_ROWS, (max_rows // 256) * 256))
    n_pad_f = _round_up(n, tn_f)
    fused_need = (2 * n_pad_f * out_dim * osz      # VMEM-resident y/output (counted x2)
                  + 2 * tn_f * feat * xsz          # double-buffered x tiles
                  + 2 * feat * out_dim * xsz       # resident weight (budgeted x2)
                  + 8 * out_dim * 4 * 4            # stats scratch + small vectors
                  + (1 << 20))                     # headroom
    use_fused = (not force_two_pass) and fused_need <= _FUSED_VMEM_BUDGET

    if use_fused:
        # Pad the batch with zero rows so the tile divides it exactly; zero rows contribute
        # exactly zero to the stats sums (no bias is added), and the padded output rows are
        # sliced off below.
        x_p = x if n_pad_f == n else jnp.pad(x, ((0, n_pad_f - n), (0, 0)))
        out = pl.pallas_call(
            functools.partial(_fused_kernel, n_rows=n, n_pad=n_pad_f),
            grid=(n_pad_f // tn_f,),
            in_specs=[
                pl.BlockSpec((tn_f, feat), lambda i: (i, 0)),       # x batch tile (pipelined)
                pl.BlockSpec((feat, out_dim), lambda i: (0, 0)),    # resident weight
                pl.BlockSpec((1, out_dim), lambda i: (0, 0)),       # gamma
                pl.BlockSpec((1, out_dim), lambda i: (0, 0)),       # beta
            ],
            out_specs=pl.BlockSpec((n_pad_f, out_dim), lambda i: (0, 0)),  # resident output
            out_shape=jax.ShapeDtypeStruct((n_pad_f, out_dim), out_dtype),
            scratch_shapes=[pltpu.VMEM((_SUBLANE, out_dim), jnp.float32)],
            compiler_params=_compiler_params(fused_need, ("arbitrary",)),
        )(x_p, w_t, g2, b2)
        return out if n_pad_f == n else out[:n]

    # ---------------- two-pass fallback (large batch) ----------------
    ysz = jnp.dtype(y_dtype).itemsize
    row_bytes = 2 * feat * xsz + 2 * out_dim * ysz
    tn = max(256, min(_MAX_TILE_ROWS, (_TILE_VMEM_BUDGET // row_bytes) // 256 * 256))
    tn = min(tn, _round_up(n, 256))
    n_pad = _round_up(n, 2 * tn)             # leading size-2 "core" axis needs an even split
    n_t2 = n_pad // (2 * tn)
    x_p = x if n_pad == n else jnp.pad(x, ((0, n_pad - n), (0, 0)))

    need1 = (2 * tn * feat * xsz + 2 * tn * out_dim * ysz
             + 2 * feat * out_dim * xsz + 8 * _SUBLANE * out_dim * 4 + (1 << 20))

    # Pass 1: matmul + per-core partial statistics.  Leading "parallel" axis gives each
    # v7x TensorCore its own accumulator slot (no read-modify-write race); on single-core
    # chips it just loops and the k==0 re-init handles the slot change.
    y_pad, psum, pssq = pl.pallas_call(
        _linear_stats_kernel,
        grid=(2, n_t2),
        in_specs=[
            pl.BlockSpec((tn, feat), lambda c, k: (c * n_t2 + k, 0)),
            pl.BlockSpec((feat, out_dim), lambda c, k: (0, 0)),
        ],
        out_specs=[
            pl.BlockSpec((tn, out_dim), lambda c, k: (c * n_t2 + k, 0)),
            pl.BlockSpec((1, _SUBLANE, out_dim), lambda c, k: (c, 0, 0)),
            pl.BlockSpec((1, _SUBLANE, out_dim), lambda c, k: (c, 0, 0)),
        ],
        out_shape=[
            jax.ShapeDtypeStruct((n_pad, out_dim), y_dtype),
            jax.ShapeDtypeStruct((2, _SUBLANE, out_dim), jnp.float32),
            jax.ShapeDtypeStruct((2, _SUBLANE, out_dim), jnp.float32),
        ],
        compiler_params=_compiler_params(need1, ("parallel", "arbitrary")),
    )(x_p, w_t)

    # Tiny (1, out) XLA epilogue: fold the per-core / per-sublane partials, hoist
    # scale/shift so pass 2 is a single fused multiply-add per tile.
    inv_n = 1.0 / n
    mean = jnp.sum(psum, axis=(0, 1)).reshape(1, out_dim) * inv_n
    # TODO(synk): E[y^2]-E[y]^2 can cancel for strongly offset y; the fused path uses a
    # two-pass variance instead (clamp keeps rsqrt finite here).
    var = jnp.maximum(jnp.sum(pssq, axis=(0, 1)).reshape(1, out_dim) * inv_n - mean * mean, 0.0)
    scale = g2 * jax.lax.rsqrt(var + _BN_EPS)
    shift = b2 - mean * scale

    tn2 = 2 * tn if (2 * tn * out_dim * (ysz + osz) * 2) <= _TILE_VMEM_BUDGET else tn
    need2 = 2 * tn2 * out_dim * (ysz + osz) + 8 * out_dim * 4 + (1 << 20)
    aliases = {0: 0} if jnp.dtype(y_dtype) == jnp.dtype(out_dtype) else {}

    out = pl.pallas_call(
        _bn_apply_kernel,
        grid=(n_pad // tn2,),
        in_specs=[
            pl.BlockSpec((tn2, out_dim), lambda i: (i, 0)),
            pl.BlockSpec((1, out_dim), lambda i: (0, 0)),
            pl.BlockSpec((1, out_dim), lambda i: (0, 0)),
        ],
        out_specs=pl.BlockSpec((tn2, out_dim), lambda i: (i, 0)),
        out_shape=jax.ShapeDtypeStruct((n_pad, out_dim), out_dtype),
        input_output_aliases=aliases,
        compiler_params=_compiler_params(need2, ("parallel",)),
    )(y_pad, scale, shift)
    return out if n_pad == n else out[:n]


def _reference(x, weight, bias, gamma, beta):
    y = x @ weight.T + bias
    mean = y.mean(axis=0, keepdims=True)
    var = ((y - mean) ** 2).mean(axis=0, keepdims=True)
    return (y - mean) / jnp.sqrt(var + _BN_EPS) * gamma + beta


if __name__ == "__main__":
    batch, feature_dim, output_dim = 512, 256, 128

    key = jax.random.PRNGKey(0)
    kx, kw = jax.random.split(key)
    x = jax.random.normal(kx, (batch, feature_dim), dtype=jnp.float32)

    # Deterministic parameter init mirroring the module's __init__:
    #   weight ~ N(0, 0.005), bias = 0.1, BN gamma = 1, BN beta = 0
    weight = 0.005 * jax.random.normal(kw, (output_dim, feature_dim), dtype=jnp.float32)
    bias = jnp.full((output_dim,), 0.1, dtype=jnp.float32)
    gamma = jnp.ones((output_dim,), dtype=jnp.float32)
    beta = jnp.zeros((output_dim,), dtype=jnp.float32)

    ref = _reference(x, weight, bias, gamma, beta)

    # 1) Fused single-pass path (y stays VMEM-resident, no HBM round trip).
    out = jax.block_until_ready(single_layer_feature_extractor(x, weight, bias, gamma, beta))
    assert out.shape == (batch, output_dim)
    err = float(jnp.max(jnp.abs(out - ref)))
    assert jnp.allclose(out, ref, atol=1e-4, rtol=1e-4), f"fused path mismatch: {err}"

    # 2) Two-pass fallback forced, f32 intermediate (exact logic check of the big-N path).
    out2 = jax.block_until_ready(single_layer_feature_extractor(
        x, weight, bias, gamma, beta, force_two_pass=True, y_dtype=jnp.float32))
    err2 = float(jnp.max(jnp.abs(out2 - ref)))
    assert jnp.allclose(out2, ref, atol=1e-4, rtol=1e-4), f"two-pass f32 mismatch: {err2}"

    # 3) Two-pass fallback with the default bf16 intermediate (bandwidth configuration).
    out3 = jax.block_until_ready(single_layer_feature_extractor(
        x, weight, bias, gamma, beta, force_two_pass=True))
    err3 = float(jnp.max(jnp.abs(out3 - ref)))
    assert jnp.allclose(out3, ref, atol=5e-2, rtol=5e-2), f"two-pass bf16 mismatch: {err3}"

    # 4) Fused path with a batch that is neither sublane- nor tile-aligned (zero-padding).
    x_odd = x[:300]
    ref_odd = _reference(x_odd, weight, bias, gamma, beta)
    out4 = jax.block_until_ready(single_layer_feature_extractor(x_odd, weight, bias, gamma, beta))
    assert out4.shape == (300, output_dim)
    err4 = float(jnp.max(jnp.abs(out4 - ref_odd)))
    assert jnp.allclose(out4, ref_odd, atol=1e-4, rtol=1e-4), f"padded fused mismatch: {err4}"

    print("KERNEL_OK")
</pallas_src>

<mosaic_0001>
module attributes {stable_mosaic.version = 11 : i64} {
  func.func @_fused_kernel(%arg0: i32, %arg1: memref<512x256xf32, #tpu.memory_space<vmem>>, %arg2: memref<256x128xf32, #tpu.memory_space<vmem>>, %arg3: memref<1x128xf32, #tpu.memory_space<vmem>>, %arg4: memref<1x128xf32, #tpu.memory_space<vmem>>, %arg5: memref<512x128xf32, #tpu.memory_space<vmem>>, %arg6: memref<8x128xf32, #tpu.memory_space<vmem>>) attributes {dimension_semantics = [#tpu.dimension_semantics<arbitrary>], iteration_bounds = array<i64: 1>, scalar_prefetch = 0 : i64, scratch_operands = 1 : i64, tpu.core_type = #tpu.core_type<tc>, window_params = [{transform_indices = @transform_0, window_bounds = array<i64: 512, 256>}, {pipeline_mode = #tpu.pipeline_mode<synchronous>, transform_indices = @transform_1, window_bounds = array<i64: 256, 128>}, {pipeline_mode = #tpu.pipeline_mode<synchronous>, transform_indices = @transform_2, window_bounds = array<i64: 1, 128>}, {pipeline_mode = #tpu.pipeline_mode<synchronous>, transform_indices = @transform_3, window_bounds = array<i64: 1, 128>}, {pipeline_mode = #tpu.pipeline_mode<synchronous>, transform_indices = @transform_4, window_bounds = array<i64: 512, 128>}]} {
    %c0 = arith.constant 0 : index
    %c0_0 = arith.constant 0 : index
    %0 = vector.load %arg1[%c0, %c0_0] : memref<512x256xf32, #tpu.memory_space<vmem>>, vector<512x256xf32>
    %c0_1 = arith.constant 0 : index
    %c0_2 = arith.constant 0 : index
    %1 = vector.load %arg2[%c0_1, %c0_2] : memref<256x128xf32, #tpu.memory_space<vmem>>, vector<256x128xf32>
    %cst = arith.constant dense<0.000000e+00> : vector<512x128xf32>
    %2 = tpu.matmul %0, %1, %cst {dimension_numbers = #tpu.dot_dimension_numbers<[1], [0], [0], [1], [0, 0, 1, 1], [], []>} : vector<512x256xf32>, vector<256x128xf32>, vector<512x128xf32> -> vector<512x128xf32>
    %c512_i32 = arith.constant 512 : i32
    %3 = arith.muli %arg0, %c512_i32 : i32
    %4 = tpu.assume_multiple %3, 8 : i32
    %5 = arith.index_cast %4 : i32 to index
    %c0_3 = arith.constant 0 : index
    %6 = vector.load %arg5[%5, %c0_3] : memref<512x128xf32, #tpu.memory_space<vmem>>, vector<512x128xf32>
    tpu.vector_store %arg5[%5, %c0_3], %2 {strides = array<i32>} : memref<512x128xf32, #tpu.memory_space<vmem>>, vector<512x128xf32>,
    %c0_i32 = arith.constant 0 : i32
    %7 = arith.cmpi eq, %arg0, %c0_i32 : i32
    %8 = arith.extui %7 : i1 to i32
    %c0_i32_4 = arith.constant 0 : i32
    %9 = arith.cmpi ne, %8, %c0_i32_4 : i32
    scf.if %9 {
      %cst_12 = arith.constant 0.000000e+00 : f32
      %18 = vector.broadcast %cst_12 : f32 to vector<8x128xf32>
      %c0_13 = arith.constant 0 : index
      %c0_14 = arith.constant 0 : index
      %19 = vector.load %arg6[%c0_13, %c0_14] : memref<8x128xf32, #tpu.memory_space<vmem>>, vector<8x128xf32>
      tpu.vector_store %arg6[%c0_13, %c0_14], %18 {strides = array<i32>} : memref<8x128xf32, #tpu.memory_space<vmem>>, vector<8x128xf32>,
    } else {
    }
    %c0_5 = arith.constant 0 : index
    %c0_6 = arith.constant 0 : index
    %10 = vector.load %arg6[%c0_5, %c0_6] : memref<8x128xf32, #tpu.memory_space<vmem>>, vector<8x128xf32>
    %11 = vector.shape_cast %2 : vector<512x128xf32> to vector<64x8x128xf32>
    %cst_7 = arith.constant dense<0.000000e+00> : vector<8x128xf32>
    %12 = vector.multi_reduction <add>, %11, %cst_7 [0] : vector<64x8x128xf32> to vector<8x128xf32>
    %13 = arith.addf %10, %12 : vector<8x128xf32>
    %c0_8 = arith.constant 0 : index
    %c0_9 = arith.constant 0 : index
    %14 = vector.load %arg6[%c0_8, %c0_9] : memref<8x128xf32, #tpu.memory_space<vmem>>, vector<8x128xf32>
    tpu.vector_store %arg6[%c0_8, %c0_9], %13 {strides = array<i32>} : memref<8x128xf32, #tpu.memory_space<vmem>>, vector<8x128xf32>,
    %c0_i32_10 = arith.constant 0 : i32
    %15 = arith.cmpi eq, %arg0, %c0_i32_10 : i32
    %16 = arith.extui %15 : i1 to i32
    %c0_i32_11 = arith.constant 0 : i32
    %17 = arith.cmpi ne, %16, %c0_i32_11 : i32
    scf.if %17 {
      %c0_12 = arith.constant 0 : index
      %c0_13 = arith.constant 0 : index
      %18 = vector.load %arg6[%c0_12, %c0_13] : memref<8x128xf32, #tpu.memory_space<vmem>>, vector<8x128xf32>
      %cst_14 = arith.constant dense<0.000000e+00> : vector<128xf32>
      %19 = vector.multi_reduction <add>, %18, %cst_14 [0] : vector<8x128xf32> to vector<128xf32>
      %20 = vector.shape_cast %19 : vector<128xf32> to vector<1x128xf32>
      %cst_15 = arith.constant 0.001953125 : f32
      %21 = vector.broadcast %cst_15 : f32 to vector<1x128xf32>
      %22 = arith.mulf %20, %21 : vector<1x128xf32>
      %cst_16 = arith.constant 0.000000e+00 : f32
      %23 = vector.broadcast %cst_16 : f32 to vector<1x128xf32>
      %c0_i32_17 = arith.constant 0 : i32
      %c512_i32_18 = arith.constant 512 : i32
      %24 = arith.muli %c0_i32_17, %c512_i32_18 : i32
      %25 = tpu.assume_multiple %24, 8 : i32
      %26 = arith.index_cast %25 : i32 to index
      %c0_19 = arith.constant 0 : index
      %27 = vector.load %arg5[%26, %c0_19] : memref<512x128xf32, #tpu.memory_space<vmem>>, vector<512x128xf32>
      %28 = vector.broadcast %22 : vector<1x128xf32> to vector<512x128xf32>
      %29 = arith.subf %27, %28 : vector<512x128xf32>
      %30 = arith.mulf %29, %29 : vector<512x128xf32>
      %cst_20 = arith.constant dense<0.000000e+00> : vector<128xf32>
      %31 = vector.multi_reduction <add>, %30, %cst_20 [0] : vector<512x128xf32> to vector<128xf32>
      %32 = vector.shape_cast %31 : vector<128xf32> to vector<1x128xf32>
      %33 = arith.addf %23, %32 : vector<1x128xf32>
      %c1_i32 = arith.constant 1 : i32
      %34 = arith.mulf %22, %22 : vector<1x128xf32>
      %cst_21 = arith.constant 0.000000e+00 : f32
      %35 = vector.broadcast %cst_21 : f32 to vector<1x128xf32>
      %36 = arith.mulf %35, %34 : vector<1x128xf32>
      %37 = arith.subf %33, %36 : vector<1x128xf32>
      %cst_22 = arith.constant 0.001953125 : f32
      %38 = vector.broadcast %cst_22 : f32 to vector<1x128xf32>
      %39 = arith.mulf %37, %38 : vector<1x128xf32>
      %c0_23 = arith.constant 0 : index
      %c0_24 = arith.constant 0 : index
      %40 = vector.load %arg3[%c0_23, %c0_24] : memref<1x128xf32, #tpu.memory_space<vmem>>, vector<1x128xf32>
      %cst_25 = arith.constant 9.99999974E-6 : f32
      %41 = vector.broadcast %cst_25 : f32 to vector<1x128xf32>
      %42 = arith.addf %39, %41 : vector<1x128xf32>
      %43 = math.rsqrt %42 : vector<1x128xf32>
      %44 = arith.mulf %40, %43 : vector<1x128xf32>
      %c0_26 = arith.constant 0 : index
      %c0_27 = arith.constant 0 : index
      %45 = vector.load %arg4[%c0_26, %c0_27] : memref<1x128xf32, #tpu.memory_space<vmem>>, vector<1x128xf32>
      %46 = arith.mulf %22, %44 : vector<1x128xf32>
      %47 = arith.subf %45, %46 : vector<1x128xf32>
      %c0_i32_28 = arith.constant 0 : i32
      %c512_i32_29 = arith.constant 512 : i32
      %48 = arith.muli %c0_i32_28, %c512_i32_29 : i32
      %49 = tpu.assume_multiple %48, 8 : i32
      %50 = arith.index_cast %49 : i32 to index
      %c0_30 = arith.constant 0 : index
      %51 = vector.load %arg5[%50, %c0_30] : memref<512x128xf32, #tpu.memory_space<vmem>>, vector<512x128xf32>
      %52 = vector.broadcast %44 : vector<1x128xf32> to vector<512x128xf32>
      %53 = arith.mulf %51, %52 : vector<512x128xf32>
      %54 = vector.broadcast %47 : vector<1x128xf32> to vector<512x128xf32>
      %55 = arith.addf %53, %54 : vector<512x128xf32>
      %56 = arith.index_cast %49 : i32 to index
      %c0_31 = arith.constant 0 : index
      %57 = vector.load %arg5[%56, %c0_31] : memref<512x128xf32, #tpu.memory_space<vmem>>, vector<512x128xf32>
      tpu.vector_store %arg5[%56, %c0_31], %55 {strides = array<i32>} : memref<512x128xf32, #tpu.memory_space<vmem>>, vector<512x128xf32>,
      %c1_i32_32 = arith.constant 1 : i32
    } else {
    }
    return
  }
  func.func @transform_0(%arg0: i32) -> (i32, i32) {
    %c0_i32 = arith.constant 0 : i32
    %c0_i32_0 = arith.constant 0 : i32
    return %arg0, %c0_i32 : i32, i32
  }
  func.func @transform_1(%arg0: i32) -> (i32, i32) {
    %c0_i32 = arith.constant 0 : i32
    %c0_i32_0 = arith.constant 0 : i32
    %c0_i32_1 = arith.constant 0 : i32
    return %c0_i32, %c0_i32_0 : i32, i32
  }
  func.func @transform_2(%arg0: i32) -> (i32, i32) {
    %c0_i32 = arith.constant 0 : i32
    %c0_i32_0 = arith.constant 0 : i32
    %c0_i32_1 = arith.constant 0 : i32
    return %c0_i32, %c0_i32_0 : i32, i32
  }
  func.func @transform_3(%arg0: i32) -> (i32, i32) {
    %c0_i32 = arith.constant 0 : i32
    %c0_i32_0 = arith.constant 0 : i32
    %c0_i32_1 = arith.constant 0 : i32
    return %c0_i32, %c0_i32_0 : i32, i32
  }
  func.func @transform_4(%arg0: i32) -> (i32, i32) {
    %c0_i32 = arith.constant 0 : i32
    %c0_i32_0 = arith.constant 0 : i32
    %c0_i32_1 = arith.constant 0 : i32
    return %c0_i32, %c0_i32_0 : i32, i32
  }
}

</mosaic_0001>

<llo_original>
// kernel: tpu_custom_call.1
$region0: #{tpu_custom_call.1}
  #allocation0 [shape = 'u32[]', space=smem, size = 0x4, offset = 0x4, fixed_abs, tag = 'smem constant byte address 0x4 - core index']
  #allocation1 [shape = 'u32[144,128]{1,0:T(1,128)}', space=vmem, size = 0x12000, scoped, tag = 'internal scratch']
  #allocation2 [shape = 'f32[8,128]{1,0:T(8,128)}', space=vmem, size = 0x1000, scoped, tag = 'scratch operand']
  %s0 = inlined_call_operand.hbm [shape: f32[512,256], index: 0, kind: input, shape index: {}]
  %s1 = inlined_call_operand.hbm [shape: f32[256,128], index: 1, kind: input, shape index: {}]
  %s2 = inlined_call_operand.vmem [shape: f32[1,128], index: 2, kind: input, shape index: {}]
  %s3 = inlined_call_operand.vmem [shape: f32[1,128], index: 3, kind: input, shape index: {}]
  %s4 = inlined_call_operand.hbm [shape: f32[512,128], index: 4, kind: output, shape index: {}]
  %s5 = sld [smem:[#allocation0]]
  $region42: #{tpu_custom_call.1} parent=0
    _
  %s7 = ssub.s32 1, %s5
  %s8 = scalar_select 0, %s7, %s5
  $region1: #{tpu_custom_call.1} parent=0
    #allocation3 [shape = 'u8[524288]{0}', space=vmem, size = 0x80000, scoped, tag = 'input window, operand 0, single buffered']
    #allocation4 [shape = 's32[1]{0}', space=sflag, size = 0x4, scoped, tag = 'scoped memory for tpu_custom_call.1']
    #allocation5 [shape = 's32[1]{0}', space=sflag, size = 0x4, scoped, tag = 'scoped memory for tpu_custom_call.1']
    #allocation6 [shape = 'u8[131072]{0}', space=vmem, size = 0x20000, scoped, tag = 'input window, operand 1, single buffered']
    #allocation7 [shape = 's32[1]{0}', space=sflag, size = 0x4, scoped, tag = 'scoped memory for tpu_custom_call.1']
    #allocation8 [shape = 'u8[262144]{0}', space=vmem, size = 0x40000, scoped, tag = 'output window, operand 0, single buffered']
    %9 = vsyncpa [#allocation4], 0
    %10 = vsyncpa [#allocation7], 0
    %11 = vsyncpa [#allocation5], 0
    // Predicated region
    $region2: #{tpu_custom_call.1} parent=1 // pred_check
      _
    $region3: #{tpu_custom_call.1} parent=1 // pred_check_branch
      %13 = sbr.rel (0) target = $region5
    $region4: #{tpu_custom_call.1} parent=1 // pred_region
      %s15 = ssub.s32 16384, 16384
      %16 = vsyncadd [#allocation4], %s15
      %s17 = sshll.u32 [#allocation3], 4
      %s18 = int_to_ptr.vmem [resolvable:$true] %s17
      %23 = dma.hbm_to_vmem [thread:$0]  %s0, 16384, %s18, [#allocation4], 256, 256, 16
    $region5: #{tpu_custom_call.1} parent=1 // pred_fallthru
      _
    // Predicated region
    $region6: #{tpu_custom_call.1} parent=1 // pred_check
      _
    $region7: #{tpu_custom_call.1} parent=1 // pred_check_branch
      %25 = sbr.rel (0) target = $region9
    $region8: #{tpu_custom_call.1} parent=1 // pred_region
      %s27 = ssub.s32 4096, 4096
      %28 = vsyncadd [#allocation7], %s27
      %s29 = sshll.u32 [#allocation6], 4
      %s30 = int_to_ptr.vmem [resolvable:$true] %s29
      %35 = dma.hbm_to_vmem [thread:$0]  %s1, 4096, %s30, [#allocation7], 128, 128, 8
    $region9: #{tpu_custom_call.1} parent=1 // pred_fallthru
      _
    // Predicated region
    $region10: #{tpu_custom_call.1} parent=1 // pred_check
      _
    $region11: #{tpu_custom_call.1} parent=1 // pred_check_branch
      %37 = sbr.rel (0) target = $region13
    $region12: #{tpu_custom_call.1} parent=1 // pred_region
      _
    $region13: #{tpu_custom_call.1} parent=1 // pred_fallthru
      _
    // Predicated region
    $region14: #{tpu_custom_call.1} parent=1 // pred_check
      _
    $region15: #{tpu_custom_call.1} parent=1 // pred_check_branch
      %39 = sbr.rel (0) target = $region17
    $region16: #{tpu_custom_call.1} parent=1 // pred_region
      _
    $region17: #{tpu_custom_call.1} parent=1 // pred_fallthru
      _
    // Predicated region
    $region18: #{tpu_custom_call.1} parent=1 // pred_check
      _
    $region19: #{tpu_custom_call.1} parent=1 // pred_check_branch
      %41 = sbr.rel (0) target = $region21
    $region20: #{tpu_custom_call.1} parent=1 // pred_region
      %42 = dma.done [#allocation4], 16384
    $region21: #{tpu_custom_call.1} parent=1 // pred_fallthru
      _
    // Predicated region
    $region22: #{tpu_custom_call.1} parent=1 // pred_check
      _
    $region23: #{tpu_custom_call.1} parent=1 // pred_check_branch
      %44 = sbr.rel (0) target = $region25
    $region24: #{tpu_custom_call.1} parent=1 // pred_region
      %45 = dma.done [#allocation7], 4096
    $region25: #{tpu_custom_call.1} parent=1 // pred_fallthru
      _
    %v46 = vld [vmem:[#allocation3] sm:$0xff]
    %v47 = vld [vmem:[#allocation3 + $0x8] sm:$0xff]
    %v48 = vld [vmem:[#allocation3 + $0x10] sm:$0xff]
    %v49 = vld [vmem:[#allocation3 + $0x18] sm:$0xff]
    %v50 = vld [vmem:[#allocation3 + $0x20] sm:$0xff]
    %v51 = vld [vmem:[#allocation3 + $0x28] sm:$0xff]
    %v52 = vld [vmem:[#allocation3 + $0x30] sm:$0xff]
    %v53 = vld [vmem:[#allocation3 + $0x38] sm:$0xff]
    %v54 = vld [vmem:[#allocation3 + $0x40] sm:$0xff]
    %v55 = vld [vmem:[#allocation3 + $0x48] sm:$0xff]
    %v56 = vld [vmem:[#allocation3 + $0x50] sm:$0xff]
    %v57 = vld [vmem:[#allocation3 + $0x58] sm:$0xff]
    %v58 = vld [vmem:[#allocation3 + $0x60] sm:$0xff]
    %v59 = vld [vmem:[#allocation3 + $0x68] sm:$0xff]
    %v60 = vld [vmem:[#allocation3 + $0x70] sm:$0xff]
    %v61 = vld [vmem:[#allocation3 + $0x78] sm:$0xff]
    %v62 = vld [vmem:[#allocation3 + $0x80] sm:$0xff]
    %v63 = vld [vmem:[#allocation3 + $0x88] sm:$0xff]
    %v64 = vld [vmem:[#allocation3 + $0x90] sm:$0xff]
    %v65 = vld [vmem:[#allocation3 + $0x98] sm:$0xff]
    %v66 = vld [vmem:[#allocation3 + $0xa0] sm:$0xff]
    %v67 = vld [vmem:[#allocation3 + $0xa8] sm:$0xff]
    %v68 = vld [vmem:[#allocation3 + $0xb0] sm:$0xff]
    %v69 = vld [vmem:[#allocation3 + $0xb8] sm:$0xff]
    %v70 = vld [vmem:[#allocation3 + $0xc0] sm:$0xff]
    %v71 = vld [vmem:[#allocation3 + $0xc8] sm:$0xff]
    %v72 = vld [vmem:[#allocation3 + $0xd0] sm:$0xff]
    %v73 = vld [vmem:[#allocation3 + $0xd8] sm:$0xff]
    %v74 = vld [vmem:[#allocation3 + $0xe0] sm:$0xff]
    %v75 = vld [vmem:[#allocation3 + $0xe8] sm:$0xff]
    %v76 = vld [vmem:[#allocation3 + $0xf0] sm:$0xff]
    %v77 = vld [vmem:[#allocation3 + $0xf8] sm:$0xff]
    %v78 = vld [vmem:[#allocation3 + $0x100] sm:$0xff]
    %v79 = vld [vmem:[#allocation3 + $0x108] sm:$0xff]
    %v80 = vld [vmem:[#allocation3 + $0x110] sm:$0xff]
    %v81 = vld [vmem:[#allocation3 + $0x118] sm:$0xff]
    %v82 = vld [vmem:[#allocation3 + $0x120] sm:$0xff]
    %v83 = vld [vmem:[#allocation3 + $0x128] sm:$0xff]
    %v84 = vld [vmem:[#allocation3 + $0x130] sm:$0xff]
    %v85 = vld [vmem:[#allocation3 + $0x138] sm:$0xff]
    %v86 = vld [vmem:[#allocation3 + $0x140] sm:$0xff]
    %v87 = vld [vmem:[#allocation3 + $0x148] sm:$0xff]
    %v88 = vld [vmem:[#allocation3 + $0x150] sm:$0xff]
    %v89 = vld [vmem:[#allocation3 + $0x158] sm:$0xff]
    %v90 = vld [vmem:[#allocation3 + $0x160] sm:$0xff]
    %v91 = vld [vmem:[#allocation3 + $0x168] sm:$0xff]
    %v92 = vld [vmem:[#allocation3 + $0x170] sm:$0xff]
    %v93 = vld [vmem:[#allocation3 + $0x178] sm:$0xff]
    %v94 = vld [vmem:[#allocation3 + $0x180] sm:$0xff]
    %v95 = vld [vmem:[#allocation3 + $0x188] sm:$0xff]
    %v96 = vld [vmem:[#allocation3 + $0x190] sm:$0xff]
    %v97 = vld [vmem:[#allocation3 + $0x198] sm:$0xff]
    %v98 = vld [vmem:[#allocation3 + $0x1a0] sm:$0xff]
    %v99 = vld [vmem:[#allocation3 + $0x1a8] sm:$0xff]
    %v100 = vld [vmem:[#allocation3 + $0x1b0] sm:$0xff]
    %v101 = vld [vmem:[#allocation3 + $0x1b8] sm:$0xff]
    %v102 = vld [vmem:[#allocation3 + $0x1c0] sm:$0xff]
    %v103 = vld [vmem:[#allocation3 + $0x1c8] sm:$0xff]
    %v104 = vld [vmem:[#allocation3 + $0x1d0] sm:$0xff]
    %v105 = vld [vmem:[#allocation3 + $0x1d8] sm:$0xff]
    %v106 = vld [vmem:[#allocation3 + $0x1e0] sm:$0xff]
    %v107 = vld [vmem:[#allocation3 + $0x1e8] sm:$0xff]
    %v108 = vld [vmem:[#allocation3 + $0x1f0] sm:$0xff]
    %v109 = vld [vmem:[#allocation3 + $0x1f8] sm:$0xff]
    %v110 = vld [vmem:[#allocation3 + $0x200] sm:$0xff]
    %v111 = vld [vmem:[#allocation3 + $0x208] sm:$0xff]
    %v112 = vld [vmem:[#allocation3 + $0x210] sm:$0xff]
    %v113 = vld [vmem:[#allocation3 + $0x218] sm:$0xff]
    %v114 = vld [vmem:[#allocation3 + $0x220] sm:$0xff]
    %v115 = vld [vmem:[#allocation3 + $0x228] sm:$0xff]
    %v116 = vld [vmem:[#allocation3 + $0x230] sm:$0xff]
    %v117 = vld [vmem:[#allocation3 + $0x238] sm:$0xff]
    %v118 = vld [vmem:[#allocation3 + $0x240] sm:$0xff]
    %v119 = vld [vmem:[#allocation3 + $0x248] sm:$0xff]
    %v120 = vld [vmem:[#allocation3 + $0x250] sm:$0xff]
    %v121 = vld [vmem:[#allocation3 + $0x258] sm:$0xff]
    %v122 = vld [vmem:[#allocation3 + $0x260] sm:$0xff]
    %v123 = vld [vmem:[#allocation3 + $0x268] sm:$0xff]
    %v124 = vld [vmem:[#allocation3 + $0x270] sm:$0xff]
    %v125 = vld [vmem:[#allocation3 + $0x278] sm:$0xff]
    %v126 = vld [vmem:[#allocation3 + $0x280] sm:$0xff]
    %v127 = vld [vmem:[#allocation3 + $0x288] sm:$0xff]
    %v128 = vld [vmem:[#allocation3 + $0x290] sm:$0xff]
    %v129 = vld [vmem:[#allocation3 + $0x298] sm:$0xff]
    %v130 = vld [vmem:[#allocation3 + $0x2a0] sm:$0xff]
    %v131 = vld [vmem:[#allocation3 + $0x2a8] sm:$0xff]
    %v132 = vld [vmem:[#allocation3 + $0x2b0] sm:$0xff]
    %v133 = vld [vmem:[#allocation3 + $0x2b8] sm:$0xff]
    %v134 = vld [vmem:[#allocation3 + $0x2c0] sm:$0xff]
    %v135 = vld [vmem:[#allocation3 + $0x2c8] sm:$0xff]
    %v136 = vld [vmem:[#allocation3 + $0x2d0] sm:$0xff]
    %v137 = vld [vmem:[#allocation3 + $0x2d8] sm:$0xff]
    %v138 = vld [vmem:[#allocation3 + $0x2e0] sm:$0xff]
    %v139 = vld [vmem:[#allocation3 + $0x2e8] sm:$0xff]
    %v140 = vld [vmem:[#allocation3 + $0x2f0] sm:$0xff]
    %v141 = vld [vmem:[#allocation3 + $0x2f8] sm:$0xff]
    %v142 = vld [vmem:[#allocation3 + $0x300] sm:$0xff]
    %v143 = vld [vmem:[#allocation3 + $0x308] sm:$0xff]
    %v144 = vld [vmem:[#allocation3 + $0x310] sm:$0xff]
    %v145 = vld [vmem:[#allocation3 + $0x318] sm:$0xff]
    %v146 = vld [vmem:[#allocation3 + $0x320] sm:$0xff]
    %v147 = vld [vmem:[#allocation3 + $0x328] sm:$0xff]
    %v148 = vld [vmem:[#allocation3 + $0x330] sm:$0xff]
    %v149 = vld [vmem:[#allocation3 + $0x338] sm:$0xff]
    %v150 = vld [vmem:[#allocation3 + $0x340] sm:$0xff]
    %v151 = vld [vmem:[#allocation3 + $0x348] sm:$0xff]
    %v152 = vld [vmem:[#allocation3 + $0x350] sm:$0xff]
    %v153 = vld [vmem:[#allocation3 + $0x358] sm:$0xff]
    %v154 = vld [vmem:[#allocation3 + $0x360] sm:$0xff]
    %v155 = vld [vmem:[#allocation3 + $0x368] sm:$0xff]
    %v156 = vld [vmem:[#allocation3 + $0x370] sm:$0xff]
    %v157 = vld [vmem:[#allocation3 + $0x378] sm:$0xff]
    %v158 = vld [vmem:[#allocation3 + $0x380] sm:$0xff]
    %v159 = vld [vmem:[#allocation3 + $0x388] sm:$0xff]
    %v160 = vld [vmem:[#allocation3 + $0x390] sm:$0xff]
    %v161 = vld [vmem:[#allocation3 + $0x398] sm:$0xff]
    %v162 = vld [vmem:[#allocation3 + $0x3a0] sm:$0xff]
    %v163 = vld [vmem:[#allocation3 + $0x3a8] sm:$0xff]
    %v164 = vld [vmem:[#allocation3 + $0x3b0] sm:$0xff]
    %v165 = vld [vmem:[#allocation3 + $0x3b8] sm:$0xff]
    %v166 = vld [vmem:[#allocation3 + $0x3c0] sm:$0xff]
    %v167 = vld [vmem:[#allocation3 + $0x3c8] sm:$0xff]
    %v168 = vld [vmem:[#allocation3 + $0x3d0] sm:$0xff]
    %v169 = vld [vmem:[#allocation3 + $0x3d8] sm:$0xff]
    %v170 = vld [vmem:[#allocation3 + $0x3e0] sm:$0xff]
    %v171 = vld [vmem:[#allocation3 + $0x3e8] sm:$0xff]
    %v172 = vld [vmem:[#allocation3 + $0x3f0] sm:$0xff]
    %v173 = vld [vmem:[#allocation3 + $0x3f8] sm:$0xff]
    %v174 = vld [vmem:[#allocation6] sm:$0xff]
    %v175 = vld [vmem:[#allocation6 + $0x8] sm:$0xff]
    %v176 = vld [vmem:[#allocation6 + $0x10] sm:$0xff]
    %v177 = vld [vmem:[#allocation6 + $0x18] sm:$0xff]
    %v178 = vld [vmem:[#allocation6 + $0x20] sm:$0xff]
    %v179 = vld [vmem:[#allocation6 + $0x28] sm:$0xff]
    %v180 = vld [vmem:[#allocation6 + $0x30] sm:$0xff]
    %v181 = vld [vmem:[#allocation6 + $0x38] sm:$0xff]
    %v182 = vld [vmem:[#allocation6 + $0x40] sm:$0xff]
    %v183 = vld [vmem:[#allocation6 + $0x48] sm:$0xff]
    %v184 = vld [vmem:[#allocation6 + $0x50] sm:$0xff]
    %v185 = vld [vmem:[#allocation6 + $0x58] sm:$0xff]
    %v186 = vld [vmem:[#allocation6 + $0x60] sm:$0xff]
    %v187 = vld [vmem:[#allocation6 + $0x68] sm:$0xff]
    %v188 = vld [vmem:[#allocation6 + $0x70] sm:$0xff]
    %v189 = vld [vmem:[#allocation6 + $0x78] sm:$0xff]
    %v190 = vld [vmem:[#allocation6 + $0x80] sm:$0xff]
    %v191 = vld [vmem:[#allocation6 + $0x88] sm:$0xff]
    %v192 = vld [vmem:[#allocation6 + $0x90] sm:$0xff]
    %v193 = vld [vmem:[#allocation6 + $0x98] sm:$0xff]
    %v194 = vld [vmem:[#allocation6 + $0xa0] sm:$0xff]
    %v195 = vld [vmem:[#allocation6 + $0xa8] sm:$0xff]
    %v196 = vld [vmem:[#allocation6 + $0xb0] sm:$0xff]
    %v197 = vld [vmem:[#allocation6 + $0xb8] sm:$0xff]
    %v198 = vld [vmem:[#allocation6 + $0xc0] sm:$0xff]
    %v199 = vld [vmem:[#allocation6 + $0xc8] sm:$0xff]
    %v200 = vld [vmem:[#allocation6 + $0xd0] sm:$0xff]
    %v201 = vld [vmem:[#allocation6 + $0xd8] sm:$0xff]
    %v202 = vld [vmem:[#allocation6 + $0xe0] sm:$0xff]
    %v203 = vld [vmem:[#allocation6 + $0xe8] sm:$0xff]
    %v204 = vld [vmem:[#allocation6 + $0xf0] sm:$0xff]
    %v205 = vld [vmem:[#allocation6 + $0xf8] sm:$0xff]
    %206 = vmatprep.subr.mxu0 0.0
    %207 = vmatpush1.msra.mxu0 %v174
    %208 = vmatprep.subr.mxu0 0.0
    %209 = vmatpush1.msra.mxu0 %v175
    %210 = vmatprep.subr.mxu0 0.0
    %211 = vmatpush1.msra.mxu0 %v176
    %212 = vmatprep.subr.mxu0 0.0
    %213 = vmatpush1.msra.mxu0 %v177
    %214 = vmatprep.subr.mxu0 0.0
    %215 = vmatpush1.msra.mxu0 %v178
    %216 = vmatprep.subr.mxu0 0.0
    %217 = vmatpush1.msra.mxu0 %v179
    %218 = vmatprep.subr.mxu0 0.0
    %219 = vmatpush1.msra.mxu0 %v180
    %220 = vmatprep.subr.mxu0 0.0
    %221 = vmatpush1.msra.mxu0 %v181
    %222 = vmatprep.subr.mxu0 0.0
    %223 = vmatpush1.msra.mxu0 %v182
    %224 = vmatprep.subr.mxu0 0.0
    %225 = vmatpush1.msra.mxu0 %v183
    %226 = vmatprep.subr.mxu0 0.0
    %227 = vmatpush1.msra.mxu0 %v184
    %228 = vmatprep.subr.mxu0 0.0
    %229 = vmatpush1.msra.mxu0 %v185
    %230 = vmatprep.subr.mxu0 0.0
    %231 = vmatpush1.msra.mxu0 %v186
    %232 = vmatprep.subr.mxu0 0.0
    %233 = vmatpush1.msra.mxu0 %v187
    %234 = vmatprep.subr.mxu0 0.0
    %235 = vmatpush1.msra.mxu0 %v188
    %236 = vmatprep.subr.mxu0 0.0
    %237 = vmatpush1.msra.mxu0 %v189
    %238 = vmatprep.subr.mxu0 0.0
    %239 = vmatpush1.msra.mxu0 %v190
    %240 = vmatprep.subr.mxu0 0.0
    %241 = vmatpush1.msra.mxu0 %v191
    %242 = vmatprep.subr.mxu0 0.0
    %243 = vmatpush1.msra.mxu0 %v192
    %244 = vmatprep.subr.mxu0 0.0
    %245 = vmatpush1.msra.mxu0 %v193
    %246 = vmatprep.subr.mxu0 0.0
    %247 = vmatpush1.msra.mxu0 %v194
    %248 = vmatprep.subr.mxu0 0.0
    %249 = vmatpush1.msra.mxu0 %v195
    %250 = vmatprep.subr.mxu0 0.0
    %251 = vmatpush1.msra.mxu0 %v196
    %252 = vmatprep.subr.mxu0 0.0
    %253 = vmatpush1.msra.mxu0 %v197
    %254 = vmatprep.subr.mxu0 0.0
    %255 = vmatpush1.msra.mxu0 %v198
    %256 = vmatprep.subr.mxu0 0.0
    %257 = vmatpush1.msra.mxu0 %v199
    %258 = vmatprep.subr.mxu0 0.0
    %259 = vmatpush1.msra.mxu0 %v200
    %260 = vmatprep.subr.mxu0 0.0
    %261 = vmatpush1.msra.mxu0 %v201
    %262 = vmatprep.subr.mxu0 0.0
    %263 = vmatpush1.msra.mxu0 %v202
    %264 = vmatprep.subr.mxu0 0.0
    %265 = vmatpush1.msra.mxu0 %v203
    %266 = vmatprep.subr.mxu0 0.0
    %267 = vmatpush1.msra.mxu0 %v204
    %268 = vmatprep.subr.mxu0 0.0
    %269 = vmatpush1.msra.mxu0 %v205
    %270 = vmatprep.mubr.f32.mxu0 %v47
    %271 = vmatmul.mubr.f32.gmra.mrb[0].mxu0 %v46
    %v272 = vpop.f32.mrb[0].mxu0
    %v273 = vadd.f32 0.0, %v272
    %v274 = vpop.f32.mrb[0].mxu0
    %275 = vmatprep.mubr.f32.mxu0 %v49
    %276 = vmatmul.mubr.f32.gmra.mrb[0].mxu0 %v48
    %v277 = vpop.f32.mrb[0].mxu0
    %v278 = vadd.f32 0.0, %v277
    %v279 = vpop.f32.mrb[0].mxu0
    %280 = vmatprep.mubr.f32.mxu0 %v51
    %281 = vmatmul.mubr.f32.gmra.mrb[0].mxu0 %v50
    %v282 = vpop.f32.mrb[0].mxu0
    %v283 = vadd.f32 0.0, %v282
    %v284 = vpop.f32.mrb[0].mxu0
    %285 = vmatprep.mubr.f32.mxu0 %v53
    %286 = vmatmul.mubr.f32.gmra.mrb[0].mxu0 %v52
    %v287 = vpop.f32.mrb[0].mxu0
    %v288 = vadd.f32 0.0, %v287
    %v289 = vpop.f32.mrb[0].mxu0
    %290 = vmatprep.mubr.f32.mxu0 %v55
    %291 = vmatmul.mubr.f32.gmra.mrb[0].mxu0 %v54
    %v292 = vpop.f32.mrb[0].mxu0
    %v293 = vadd.f32 0.0, %v292
    %v294 = vpop.f32.mrb[0].mxu0
    %295 = vmatprep.mubr.f32.mxu0 %v57
    %296 = vmatmul.mubr.f32.gmra.mrb[0].mxu0 %v56
    %v297 = vpop.f32.mrb[0].mxu0
    %v298 = vadd.f32 0.0, %v297
    %v299 = vpop.f32.mrb[0].mxu0
    %300 = vmatprep.mubr.f32.mxu0 %v59
    %301 = vmatmul.mubr.f32.gmra.mrb[0].mxu0 %v58
    %v302 = vpop.f32.mrb[0].mxu0
    %v303 = vadd.f32 0.0, %v302
    %v304 = vpop.f32.mrb[0].mxu0
    %305 = vmatprep.mubr.f32.mxu0 %v61
    %306 = vmatmul.mubr.f32.gmra.mrb[0].mxu0 %v60
    %v307 = vpop.f32.mrb[0].mxu0
    %v308 = vadd.f32 0.0, %v307
    %v309 = vpop.f32.mrb[0].mxu0
    %310 = vmatprep.mubr.f32.mxu0 %v63
    %311 = vmatmul.mubr.f32.gmra.mrb[0].mxu0 %v62
    %v312 = vpop.f32.mrb[0].mxu0
    %v313 = vadd.f32 0.0, %v312
    %v314 = vpop.f32.mrb[0].mxu0
    %315 = vmatprep.mubr.f32.mxu0 %v65
    %316 = vmatmul.mubr.f32.gmra.mrb[0].mxu0 %v64
    %v317 = vpop.f32.mrb[0].mxu0
    %v318 = vadd.f32 0.0, %v317
    %v319 = vpop.f32.mrb[0].mxu0
    %320 = vmatprep.mubr.f32.mxu0 %v67
    %321 = vmatmul.mubr.f32.gmra.mrb[0].mxu0 %v66
    %v322 = vpop.f32.mrb[0].mxu0
    %v323 = vadd.f32 0.0, %v322
    %v324 = vpop.f32.mrb[0].mxu0
    %325 = vmatprep.mubr.f32.mxu0 %v69
    %326 = vmatmul.mubr.f32.gmra.mrb[0].mxu0 %v68
    %v327 = vpop.f32.mrb[0].mxu0
    %v328 = vadd.f32 0.0, %v327
    %v329 = vpop.f32.mrb[0].mxu0
    %330 = vmatprep.mubr.f32.mxu0 %v71
    %331 = vmatmul.mubr.f32.gmra.mrb[0].mxu0 %v70
    %v332 = vpop.f32.mrb[0].mxu0
    %v333 = vadd.f32 0.0, %v332
    %v334 = vpop.f32.mrb[0].mxu0
    %335 = vmatprep.mubr.f32.mxu0 %v73
    %336 = vmatmul.mubr.f32.gmra.mrb[0].mxu0 %v72
    %v337 = vpop.f32.mrb[0].mxu0
    %v338 = vadd.f32 0.0, %v337
    %v339 = vpop.f32.mrb[0].mxu0
    %340 = vmatprep.mubr.f32.mxu0 %v75
    %341 = vmatmul.mubr.f32.gmra.mrb[0].mxu0 %v74
    %v342 = vpop.f32.mrb[0].mxu0
    %v343 = vadd.f32 0.0, %v342
    %v344 = vpop.f32.mrb[0].mxu0
    %345 = vmatprep.mubr.f32.mxu0 %v77
    %346 = vmatmul.mubr.f32.gmra.mrb[0].mxu0 %v76
    %v347 = vpop.f32.mrb[0].mxu0
    %v348 = vadd.f32 0.0, %v347
    %v349 = vpop.f32.mrb[0].mxu0
    %350 = vmatprep.mubr.f32.mxu0 %v79
    %351 = vmatmul.mubr.f32.gmra.mrb[0].mxu0 %v78
    %v352 = vpop.f32.mrb[0].mxu0
    %v353 = vadd.f32 0.0, %v352
    %v354 = vpop.f32.mrb[0].mxu0
    %355 = vmatprep.mubr.f32.mxu0 %v81
    %356 = vmatmul.mubr.f32.gmra.mrb[0].mxu0 %v80
    %v357 = vpop.f32.mrb[0].mxu0
    %v358 = vadd.f32 0.0, %v357
    %v359 = vpop.f32.mrb[0].mxu0
    %360 = vmatprep.mubr.f32.mxu0 %v83
    %361 = vmatmul.mubr.f32.gmra.mrb[0].mxu0 %v82
    %v362 = vpop.f32.mrb[0].mxu0
    %v363 = vadd.f32 0.0, %v362
    %v364 = vpop.f32.mrb[0].mxu0
    %365 = vmatprep.mubr.f32.mxu0 %v85
    %366 = vmatmul.mubr.f32.gmra.mrb[0].mxu0 %v84
    %v367 = vpop.f32.mrb[0].mxu0
    %v368 = vadd.f32 0.0, %v367
    %v369 = vpop.f32.mrb[0].mxu0
    %370 = vmatprep.mubr.f32.mxu0 %v87
    %371 = vmatmul.mubr.f32.gmra.mrb[0].mxu0 %v86
    %v372 = vpop.f32.mrb[0].mxu0
    %v373 = vadd.f32 0.0, %v372
    %v374 = vpop.f32.mrb[0].mxu0
    %375 = vmatprep.mubr.f32.mxu0 %v89
    %376 = vmatmul.mubr.f32.gmra.mrb[0].mxu0 %v88
    %v377 = vpop.f32.mrb[0].mxu0
    %v378 = vadd.f32 0.0, %v377
    %v379 = vpop.f32.mrb[0].mxu0
    %380 = vmatprep.mubr.f32.mxu0 %v91
    %381 = vmatmul.mubr.f32.gmra.mrb[0].mxu0 %v90
    %v382 = vpop.f32.mrb[0].mxu0
    %v383 = vadd.f32 0.0, %v382
    %v384 = vpop.f32.mrb[0].mxu0
    %385 = vmatprep.mubr.f32.mxu0 %v93
    %386 = vmatmul.mubr.f32.gmra.mrb[0].mxu0 %v92
    %v387 = vpop.f32.mrb[0].mxu0
    %v388 = vadd.f32 0.0, %v387
    %v389 = vpop.f32.mrb[0].mxu0
    %390 = vmatprep.mubr.f32.mxu0 %v95
    %391 = vmatmul.mubr.f32.gmra.mrb[0].mxu0 %v94
    %v392 = vpop.f32.mrb[0].mxu0
    %v393 = vadd.f32 0.0, %v392
    %v394 = vpop.f32.mrb[0].mxu0
    %395 = vmatprep.mubr.f32.mxu0 %v97
    %396 = vmatmul.mubr.f32.gmra.mrb[0].mxu0 %v96
    %v397 = vpop.f32.mrb[0].mxu0
    %v398 = vadd.f32 0.0, %v397
    %v399 = vpop.f32.mrb[0].mxu0
    %400 = vmatprep.mubr.f32.mxu0 %v99
    %401 = vmatmul.mubr.f32.gmra.mrb[0].mxu0 %v98
    %v402 = vpop.f32.mrb[0].mxu0
    %v403 = vadd.f32 0.0, %v402
    %v404 = vpop.f32.mrb[0].mxu0
    %405 = vmatprep.mubr.f32.mxu0 %v101
    %406 = vmatmul.mubr.f32.gmra.mrb[0].mxu0 %v100
    %v407 = vpop.f32.mrb[0].mxu0
    %v408 = vadd.f32 0.0, %v407
    %v409 = vpop.f32.mrb[0].mxu0
    %410 = vmatprep.mubr.f32.mxu0 %v103
    %411 = vmatmul.mubr.f32.gmra.mrb[0].mxu0 %v102
    %v412 = vpop.f32.mrb[0].mxu0
    %v413 = vadd.f32 0.0, %v412
    %v414 = vpop.f32.mrb[0].mxu0
    %415 = vmatprep.mubr.f32.mxu0 %v105
    %416 = vmatmul.mubr.f32.gmra.mrb[0].mxu0 %v104
    %v417 = vpop.f32.mrb[0].mxu0
    %v418 = vadd.f32 0.0, %v417
    %v419 = vpop.f32.mrb[0].mxu0
    %420 = vmatprep.mubr.f32.mxu0 %v107
    %421 = vmatmul.mubr.f32.gmra.mrb[0].mxu0 %v106
    %v422 = vpop.f32.mrb[0].mxu0
    %v423 = vadd.f32 0.0, %v422
    %v424 = vpop.f32.mrb[0].mxu0
    %425 = vmatprep.mubr.f32.mxu0 %v109
    %426 = vmatmul.mubr.f32.gmra.mrb[0].mxu0 %v108
    %v427 = vpop.f32.mrb[0].mxu0
    %v428 = vadd.f32 0.0, %v427
    %v429 = vpop.f32.mrb[0].mxu0
    %430 = vmatprep.mubr.f32.mxu0 %v111
    %431 = vmatmul.mubr.f32.gmra.mrb[0].mxu0 %v110
    %v432 = vpop.f32.mrb[0].mxu0
    %v433 = vadd.f32 0.0, %v432
    %v434 = vpop.f32.mrb[0].mxu0
    %435 = vmatprep.mubr.f32.mxu0 %v113
    %436 = vmatmul.mubr.f32.gmra.mrb[0].mxu0 %v112
    %v437 = vpop.f32.mrb[0].mxu0
    %v438 = vadd.f32 0.0, %v437
    %v439 = vpop.f32.mrb[0].mxu0
    %440 = vmatprep.mubr.f32.mxu0 %v115
    %441 = vmatmul.mubr.f32.gmra.mrb[0].mxu0 %v114
    %v442 = vpop.f32.mrb[0].mxu0
    %v443 = vadd.f32 0.0, %v442
    %v444 = vpop.f32.mrb[0].mxu0
    %445 = vmatprep.mubr.f32.mxu0 %v117
    %446 = vmatmul.mubr.f32.gmra.mrb[0].mxu0 %v116
    %v447 = vpop.f32.mrb[0].mxu0
    %v448 = vadd.f32 0.0, %v447
    %v449 = vpop.f32.mrb[0].mxu0
    %450 = vmatprep.mubr.f32.mxu0 %v119
    %451 = vmatmul.mubr.f32.gmra.mrb[0].mxu0 %v118
    %v452 = vpop.f32.mrb[0].mxu0
    %v453 = vadd.f32 0.0, %v452
    %v454 = vpop.f32.mrb[0].mxu0
    %455 = vmatprep.mubr.f32.mxu0 %v121
    %456 = vmatmul.mubr.f32.gmra.mrb[0].mxu0 %v120
    %v457 = vpop.f32.mrb[0].mxu0
    %v458 = vadd.f32 0.0, %v457
    %v459 = vpop.f32.mrb[0].mxu0
    %460 = vmatprep.mubr.f32.mxu0 %v123
    %461 = vmatmul.mubr.f32.gmra.mrb[0].mxu0 %v122
    %v462 = vpop.f32.mrb[0].mxu0
    %v463 = vadd.f32 0.0, %v462
    %v464 = vpop.f32.mrb[0].mxu0
    %465 = vmatprep.mubr.f32.mxu0 %v125
    %466 = vmatmul.mubr.f32.gmra.mrb[0].mxu0 %v124
    %v467 = vpop.f32.mrb[0].mxu0
    %v468 = vadd.f32 0.0, %v467
    %v469 = vpop.f32.mrb[0].mxu0
    %470 = vmatprep.mubr.f32.mxu0 %v127
    %471 = vmatmul.mubr.f32.gmra.mrb[0].mxu0 %v126
    %v472 = vpop.f32.mrb[0].mxu0
    %v473 = vadd.f32 0.0, %v472
    %v474 = vpop.f32.mrb[0].mxu0
    %475 = vmatprep.mubr.f32.mxu0 %v129
    %476 = vmatmul.mubr.f32.gmra.mrb[0].mxu0 %v128
    %v477 = vpop.f32.mrb[0].mxu0
    %v478 = vadd.f32 0.0, %v477
    %v479 = vpop.f32.mrb[0].mxu0
    %480 = vmatprep.mubr.f32.mxu0 %v131
    %481 = vmatmul.mubr.f32.gmra.mrb[0].mxu0 %v130
    %v482 = vpop.f32.mrb[0].mxu0
    %v483 = vadd.f32 0.0, %v482
    %v484 = vpop.f32.mrb[0].mxu0
    %485 = vmatprep.mubr.f32.mxu0 %v133
    %486 = vmatmul.mubr.f32.gmra.mrb[0].mxu0 %v132
    %v487 = vpop.f32.mrb[0].mxu0
    %v488 = vadd.f32 0.0, %v487
    %v489 = vpop.f32.mrb[0].mxu0
    %490 = vmatprep.mubr.f32.mxu0 %v135
    %491 = vmatmul.mubr.f32.gmra.mrb[0].mxu0 %v134
    %v492 = vpop.f32.mrb[0].mxu0
    %v493 = vadd.f32 0.0, %v492
    %v494 = vpop.f32.mrb[0].mxu0
    %495 = vmatprep.mubr.f32.mxu0 %v137
    %496 = vmatmul.mubr.f32.gmra.mrb[0].mxu0 %v136
    %v497 = vpop.f32.mrb[0].mxu0
    %v498 = vadd.f32 0.0, %v497
    %v499 = vpop.f32.mrb[0].mxu0
    %500 = vmatprep.mubr.f32.mxu0 %v139
    %501 = vmatmul.mubr.f32.gmra.mrb[0].mxu0 %v138
    %v502 = vpop.f32.mrb[0].mxu0
    %v503 = vadd.f32 0.0, %v502
    %v504 = vpop.f32.mrb[0].mxu0
    %505 = vmatprep.mubr.f32.mxu0 %v141
    %506 = vmatmul.mubr.f32.gmra.mrb[0].mxu0 %v140
    %v507 = vpop.f32.mrb[0].mxu0
    %v508 = vadd.f32 0.0, %v507
    %v509 = vpop.f32.mrb[0].mxu0
    %510 = vmatprep.mubr.f32.mxu0 %v143
    %511 = vmatmul.mubr.f32.gmra.mrb[0].mxu0 %v142
    %v512 = vpop.f32.mrb[0].mxu0
    %v513 = vadd.f32 0.0, %v512
    %v514 = vpop.f32.mrb[0].mxu0
    %515 = vmatprep.mubr.f32.mxu0 %v145
    %516 = vmatmul.mubr.f32.gmra.mrb[0].mxu0 %v144
    %v517 = vpop.f32.mrb[0].mxu0
    %v518 = vadd.f32 0.0, %v517
    %v519 = vpop.f32.mrb[0].mxu0
    %520 = vmatprep.mubr.f32.mxu0 %v147
    %521 = vmatmul.mubr.f32.gmra.mrb[0].mxu0 %v146
    %v522 = vpop.f32.mrb[0].mxu0
    %v523 = vadd.f32 0.0, %v522
    %v524 = vpop.f32.mrb[0].mxu0
    %525 = vmatprep.mubr.f32.mxu0 %v149
    %526 = vmatmul.mubr.f32.gmra.mrb[0].mxu0 %v148
    %v527 = vpop.f32.mrb[0].mxu0
    %v528 = vadd.f32 0.0, %v527
    %v529 = vpop.f32.mrb[0].mxu0
    %530 = vmatprep.mubr.f32.mxu0 %v151
    %531 = vmatmul.mubr.f32.gmra.mrb[0].mxu0 %v150
    %v532 = vpop.f32.mrb[0].mxu0
    %v533 = vadd.f32 0.0, %v532
    %v534 = vpop.f32.mrb[0].mxu0
    %535 = vmatprep.mubr.f32.mxu0 %v153
    %536 = vmatmul.mubr.f32.gmra.mrb[0].mxu0 %v152
    %v537 = vpop.f32.mrb[0].mxu0
    %v538 = vadd.f32 0.0, %v537
    %v539 = vpop.f32.mrb[0].mxu0
    %540 = vmatprep.mubr.f32.mxu0 %v155
    %541 = vmatmul.mubr.f32.gmra.mrb[0].mxu0 %v154
    %v542 = vpop.f32.mrb[0].mxu0
    %v543 = vadd.f32 0.0, %v542
    %v544 = vpop.f32.mrb[0].mxu0
    %545 = vmatprep.mubr.f32.mxu0 %v157
    %546 = vmatmul.mubr.f32.gmra.mrb[0].mxu0 %v156
    %v547 = vpop.f32.mrb[0].mxu0
    %v548 = vadd.f32 0.0, %v547
    %v549 = vpop.f32.mrb[0].mxu0
    %550 = vmatprep.mubr.f32.mxu0 %v159
    %551 = vmatmul.mubr.f32.gmra.mrb[0].mxu0 %v158
    %v552 = vpop.f32.mrb[0].mxu0
    %v553 = vadd.f32 0.0, %v552
    %v554 = vpop.f32.mrb[0].mxu0
    %555 = vmatprep.mubr.f32.mxu0 %v161
    %556 = vmatmul.mubr.f32.gmra.mrb[0].mxu0 %v160
    %v557 = vpop.f32.mrb[0].mxu0
    %v558 = vadd.f32 0.0, %v557
    %v559 = vpop.f32.mrb[0].mxu0
    %560 = vmatprep.mubr.f32.mxu0 %v163
    %561 = vmatmul.mubr.f32.gmra.mrb[0].mxu0 %v162
    %v562 = vpop.f32.mrb[0].mxu0
    %v563 = vadd.f32 0.0, %v562
    %v564 = vpop.f32.mrb[0].mxu0
    %565 = vmatprep.mubr.f32.mxu0 %v165
    %566 = vmatmul.mubr.f32.gmra.mrb[0].mxu0 %v164
    %v567 = vpop.f32.mrb[0].mxu0
    %v568 = vadd.f32 0.0, %v567
    %v569 = vpop.f32.mrb[0].mxu0
    %570 = vmatprep.mubr.f32.mxu0 %v167
    %571 = vmatmul.mubr.f32.gmra.mrb[0].mxu0 %v166
    %v572 = vpop.f32.mrb[0].mxu0
    %v573 = vadd.f32 0.0, %v572
    %v574 = vpop.f32.mrb[0].mxu0
    %575 = vmatprep.mubr.f32.mxu0 %v169
    %576 = vmatmul.mubr.f32.gmra.mrb[0].mxu0 %v168
    %v577 = vpop.f32.mrb[0].mxu0
    %v578 = vadd.f32 0.0, %v577
    %v579 = vpop.f32.mrb[0].mxu0
    %580 = vmatprep.mubr.f32.mxu0 %v171
    %581 = vmatmul.mubr.f32.gmra.mrb[0].mxu0 %v170
    %v582 = vpop.f32.mrb[0].mxu0
    %v583 = vadd.f32 0.0, %v582
    %v584 = vpop.f32.mrb[0].mxu0
    %585 = vmatprep.mubr.f32.mxu0 %v173
    %586 = vmatmul.mubr.f32.gmra.mrb[0].mxu0 %v172
    %v587 = vpop.f32.mrb[0].mxu0
    %v588 = vadd.f32 0.0, %v587
    %v589 = vpop.f32.mrb[0].mxu0
    %590 = vdwg.mxu0
    %s591 = smul.u32 0, 512
    %s592 = scalar_lea.vmem [#allocation8], %s591
    %593 = vst [vmem:[%s592] sm:$0xff] %v273
    %594 = vst [vmem:[%s592 + $0x8] sm:$0xff] %v278
    %595 = vst [vmem:[%s592 + $0x10] sm:$0xff] %v283
    %596 = vst [vmem:[%s592 + $0x18] sm:$0xff] %v288
    %597 = vst [vmem:[%s592 + $0x20] sm:$0xff] %v293
    %598 = vst [vmem:[%s592 + $0x28] sm:$0xff] %v298
    %599 = vst [vmem:[%s592 + $0x30] sm:$0xff] %v303
    %600 = vst [vmem:[%s592 + $0x38] sm:$0xff] %v308
    %601 = vst [vmem:[%s592 + $0x40] sm:$0xff] %v313
    %602 = vst [vmem:[%s592 + $0x48] sm:$0xff] %v318
    %603 = vst [vmem:[%s592 + $0x50] sm:$0xff] %v323
    %604 = vst [vmem:[%s592 + $0x58] sm:$0xff] %v328
    %605 = vst [vmem:[%s592 + $0x60] sm:$0xff] %v333
    %606 = vst [vmem:[%s592 + $0x68] sm:$0xff] %v338
    %607 = vst [vmem:[%s592 + $0x70] sm:$0xff] %v343
    %608 = vst [vmem:[%s592 + $0x78] sm:$0xff] %v348
    %609 = vst [vmem:[%s592 + $0x80] sm:$0xff] %v353
    %610 = vst [vmem:[%s592 + $0x88] sm:$0xff] %v358
    %611 = vst [vmem:[%s592 + $0x90] sm:$0xff] %v363
    %612 = vst [vmem:[%s592 + $0x98] sm:$0xff] %v368
    %613 = vst [vmem:[%s592 + $0xa0] sm:$0xff] %v373
    %614 = vst [vmem:[%s592 + $0xa8] sm:$0xff] %v378
    %615 = vst [vmem:[%s592 + $0xb0] sm:$0xff] %v383
    %616 = vst [vmem:[%s592 + $0xb8] sm:$0xff] %v388
    %617 = vst [vmem:[%s592 + $0xc0] sm:$0xff] %v393
    %618 = vst [vmem:[%s592 + $0xc8] sm:$0xff] %v398
    %619 = vst [vmem:[%s592 + $0xd0] sm:$0xff] %v403
    %620 = vst [vmem:[%s592 + $0xd8] sm:$0xff] %v408
    %621 = vst [vmem:[%s592 + $0xe0] sm:$0xff] %v413
    %622 = vst [vmem:[%s592 + $0xe8] sm:$0xff] %v418
    %623 = vst [vmem:[%s592 + $0xf0] sm:$0xff] %v423
    %624 = vst [vmem:[%s592 + $0xf8] sm:$0xff] %v428
    %625 = vst [vmem:[%s592 + $0x100] sm:$0xff] %v433
    %626 = vst [vmem:[%s592 + $0x108] sm:$0xff] %v438
    %627 = vst [vmem:[%s592 + $0x110] sm:$0xff] %v443
    %628 = vst [vmem:[%s592 + $0x118] sm:$0xff] %v448
    %629 = vst [vmem:[%s592 + $0x120] sm:$0xff] %v453
    %630 = vst [vmem:[%s592 + $0x128] sm:$0xff] %v458
    %631 = vst [vmem:[%s592 + $0x130] sm:$0xff] %v463
    %632 = vst [vmem:[%s592 + $0x138] sm:$0xff] %v468
    %633 = vst [vmem:[%s592 + $0x140] sm:$0xff] %v473
    %634 = vst [vmem:[%s592 + $0x148] sm:$0xff] %v478
    %635 = vst [vmem:[%s592 + $0x150] sm:$0xff] %v483
    %636 = vst [vmem:[%s592 + $0x158] sm:$0xff] %v488
    %637 = vst [vmem:[%s592 + $0x160] sm:$0xff] %v493
    %638 = vst [vmem:[%s592 + $0x168] sm:$0xff] %v498
    %639 = vst [vmem:[%s592 + $0x170] sm:$0xff] %v503
    %640 = vst [vmem:[%s592 + $0x178] sm:$0xff] %v508
    %641 = vst [vmem:[%s592 + $0x180] sm:$0xff] %v513
    %642 = vst [vmem:[%s592 + $0x188] sm:$0xff] %v518
    %643 = vst [vmem:[%s592 + $0x190] sm:$0xff] %v523
    %644 = vst [vmem:[%s592 + $0x198] sm:$0xff] %v528
    %645 = vst [vmem:[%s592 + $0x1a0] sm:$0xff] %v533
    %646 = vst [vmem:[%s592 + $0x1a8] sm:$0xff] %v538
    %647 = vst [vmem:[%s592 + $0x1b0] sm:$0xff] %v543
    %648 = vst [vmem:[%s592 + $0x1b8] sm:$0xff] %v548
    %649 = vst [vmem:[%s592 + $0x1c0] sm:$0xff] %v553
    %650 = vst [vmem:[%s592 + $0x1c8] sm:$0xff] %v558
    %651 = vst [vmem:[%s592 + $0x1d0] sm:$0xff] %v563
    %652 = vst [vmem:[%s592 + $0x1d8] sm:$0xff] %v568
    %653 = vst [vmem:[%s592 + $0x1e0] sm:$0xff] %v573
    %654 = vst [vmem:[%s592 + $0x1e8] sm:$0xff] %v578
    %655 = vst [vmem:[%s592 + $0x1f0] sm:$0xff] %v583
    %656 = vst [vmem:[%s592 + $0x1f8] sm:$0xff] %v588
    %p657 = scmp.eq.s32.totalorder 0, 0
    // Predicated region
    $region26: #{tpu_custom_call.1} parent=1 // pred_check
      %p658 = pneg %p657
    $region27: #{tpu_custom_call.1} parent=1 // pred_check_branch
      %660 = sbr.rel (%p658) target = $region29
    $region28: #{tpu_custom_call.1} parent=1 // pred_region
      %661 = vst [vmem:[#allocation2] sm:$0xff] 0.0
    $region29: #{tpu_custom_call.1} parent=1 // pred_fallthru
      _
    %v662 = vld [vmem:[#allocation2] sm:$0xff]
    %v663 = vadd.f32 %v273, %v278
    %v664 = vadd.f32 %v663, %v283
    %v665 = vadd.f32 %v664, %v288
    %v666 = vadd.f32 %v665, %v293
    %v667 = vadd.f32 %v666, %v298
    %v668 = vadd.f32 %v667, %v303
    %v669 = vadd.f32 %v668, %v308
    %v670 = vadd.f32 %v669, %v313
    %v671 = vadd.f32 %v670, %v318
    %v672 = vadd.f32 %v671, %v323
    %v673 = vadd.f32 %v672, %v328
    %v674 = vadd.f32 %v673, %v333
    %v675 = vadd.f32 %v674, %v338
    %v676 = vadd.f32 %v675, %v343
    %v677 = vadd.f32 %v676, %v348
    %v678 = vadd.f32 %v677, %v353
    %v679 = vadd.f32 %v678, %v358
    %v680 = vadd.f32 %v679, %v363
    %v681 = vadd.f32 %v680, %v368
    %v682 = vadd.f32 %v681, %v373
    %v683 = vadd.f32 %v682, %v378
    %v684 = vadd.f32 %v683, %v383
    %v685 = vadd.f32 %v684, %v388
    %v686 = vadd.f32 %v685, %v393
    %v687 = vadd.f32 %v686, %v398
    %v688 = vadd.f32 %v687, %v403
    %v689 = vadd.f32 %v688, %v408
    %v690 = vadd.f32 %v689, %v413
    %v691 = vadd.f32 %v690, %v418
    %v692 = vadd.f32 %v691, %v423
    %v693 = vadd.f32 %v692, %v428
    %v694 = vadd.f32 %v693, %v433
    %v695 = vadd.f32 %v694, %v438
    %v696 = vadd.f32 %v695, %v443
    %v697 = vadd.f32 %v696, %v448
    %v698 = vadd.f32 %v697, %v453
    %v699 = vadd.f32 %v698, %v458
    %v700 = vadd.f32 %v699, %v463
    %v701 = vadd.f32 %v700, %v468
    %v702 = vadd.f32 %v701, %v473
    %v703 = vadd.f32 %v702, %v478
    %v704 = vadd.f32 %v703, %v483
    %v705 = vadd.f32 %v704, %v488
    %v706 = vadd.f32 %v705, %v493
    %v707 = vadd.f32 %v706, %v498
    %v708 = vadd.f32 %v707, %v503
    %v709 = vadd.f32 %v708, %v508
    %v710 = vadd.f32 %v709, %v513
    %v711 = vadd.f32 %v710, %v518
    %v712 = vadd.f32 %v711, %v523
    %v713 = vadd.f32 %v712, %v528
    %v714 = vadd.f32 %v713, %v533
    %v715 = vadd.f32 %v714, %v538
    %v716 = vadd.f32 %v715, %v543
    %v717 = vadd.f32 %v716, %v548
    %v718 = vadd.f32 %v717, %v553
    %v719 = vadd.f32 %v718, %v558
    %v720 = vadd.f32 %v719, %v563
    %v721 = vadd.f32 %v720, %v568
    %v722 = vadd.f32 %v721, %v573
    %v723 = vadd.f32 %v722, %v578
    %v724 = vadd.f32 %v723, %v583
    %v725 = vadd.f32 %v724, %v588
    %v726 = vadd.f32 %v662, %v725
    %727 = vst [vmem:[#allocation2] sm:$0xff] %v726
    // Predicated region
    $region30: #{tpu_custom_call.1} parent=1 // pred_check
      %p728 = pneg %p657
    $region31: #{tpu_custom_call.1} parent=1 // pred_check_branch
      %730 = sbr.rel (%p728) target = $region33
    $region32: #{tpu_custom_call.1} parent=1 // pred_region
      %v731 = vld [vmem:[#allocation2] sm:$0xff]
      %v732 = vrot.slane %v731, 4
      %v733 = vadd.f32 %v731, %v732
      %v734 = vrot.slane %v733, 2
      %v735 = vadd.f32 %v733, %v734
      %v736 = vrot.slane %v735, 1
      %v737 = vadd.f32 %v735, %v736
      %v738 = vmul.f32 %v737, 0.001953125
      %v739 = vld [vmem:[#allocation8] sm:$0xff]
      %v740 = vld [vmem:[#allocation8 + $0x8] sm:$0xff]
      %v741 = vld [vmem:[#allocation8 + $0x10] sm:$0xff]
      %v742 = vld [vmem:[#allocation8 + $0x18] sm:$0xff]
      %v743 = vld [vmem:[#allocation8 + $0x20] sm:$0xff]
      %v744 = vld [vmem:[#allocation8 + $0x28] sm:$0xff]
      %v745 = vld [vmem:[#allocation8 + $0x30] sm:$0xff]
      %v746 = vld [vmem:[#allocation8 + $0x38] sm:$0xff]
      %v747 = vld [vmem:[#allocation8 + $0x40] sm:$0xff]
      %v748 = vld [vmem:[#allocation8 + $0x48] sm:$0xff]
      %v749 = vld [vmem:[#allocation8 + $0x50] sm:$0xff]
      %v750 = vld [vmem:[#allocation8 + $0x58] sm:$0xff]
      %v751 = vld [vmem:[#allocation8 + $0x60] sm:$0xff]
      %v752 = vld [vmem:[#allocation8 + $0x68] sm:$0xff]
      %v753 = vld [vmem:[#allocation8 + $0x70] sm:$0xff]
      %v754 = vld [vmem:[#allocation8 + $0x78] sm:$0xff]
      %v755 = vld [vmem:[#allocation8 + $0x80] sm:$0xff]
      %v756 = vld [vmem:[#allocation8 + $0x88] sm:$0xff]
      %v757 = vld [vmem:[#allocation8 + $0x90] sm:$0xff]
      %v758 = vld [vmem:[#allocation8 + $0x98] sm:$0xff]
      %v759 = vld [vmem:[#allocation8 + $0xa0] sm:$0xff]
      %v760 = vld [vmem:[#allocation8 + $0xa8] sm:$0xff]
      %v761 = vld [vmem:[#allocation8 + $0xb0] sm:$0xff]
      %v762 = vld [vmem:[#allocation8 + $0xb8] sm:$0xff]
      %v763 = vld [vmem:[#allocation8 + $0xc0] sm:$0xff]
      %v764 = vld [vmem:[#allocation8 + $0xc8] sm:$0xff]
      %v765 = vld [vmem:[#allocation8 + $0xd0] sm:$0xff]
      %v766 = vld [vmem:[#allocation8 + $0xd8] sm:$0xff]
      %v767 = vld [vmem:[#allocation8 + $0xe0] sm:$0xff]
      %v768 = vld [vmem:[#allocation8 + $0xe8] sm:$0xff]
      %v769 = vld [vmem:[#allocation8 + $0xf0] sm:$0xff]
      %v770 = vld [vmem:[#allocation8 + $0xf8] sm:$0xff]
      %v771 = vld [vmem:[#allocation8 + $0x100] sm:$0xff]
      %v772 = vld [vmem:[#allocation8 + $0x108] sm:$0xff]
      %v773 = vld [vmem:[#allocation8 + $0x110] sm:$0xff]
      %v774 = vld [vmem:[#allocation8 + $0x118] sm:$0xff]
      %v775 = vld [vmem:[#allocation8 + $0x120] sm:$0xff]
      %v776 = vld [vmem:[#allocation8 + $0x128] sm:$0xff]
      %v777 = vld [vmem:[#allocation8 + $0x130] sm:$0xff]
      %v778 = vld [vmem:[#allocation8 + $0x138] sm:$0xff]
      %v779 = vld [vmem:[#allocation8 + $0x140] sm:$0xff]
      %v780 = vld [vmem:[#allocation8 + $0x148] sm:$0xff]
      %v781 = vld [vmem:[#allocation8 + $0x150] sm:$0xff]
      %v782 = vld [vmem:[#allocation8 + $0x158] sm:$0xff]
      %v783 = vld [vmem:[#allocation8 + $0x160] sm:$0xff]
      %v784 = vld [vmem:[#allocation8 + $0x168] sm:$0xff]
      %v785 = vld [vmem:[#allocation8 + $0x170] sm:$0xff]
      %v786 = vld [vmem:[#allocation8 + $0x178] sm:$0xff]
      %v787 = vld [vmem:[#allocation8 + $0x180] sm:$0xff]
      %v788 = vld [vmem:[#allocation8 + $0x188] sm:$0xff]
      %v789 = vld [vmem:[#allocation8 + $0x190] sm:$0xff]
      %v790 = vld [vmem:[#allocation8 + $0x198] sm:$0xff]
      %v791 = vld [vmem:[#allocation8 + $0x1a0] sm:$0xff]
      %v792 = vld [vmem:[#allocation8 + $0x1a8] sm:$0xff]
      %v793 = vld [vmem:[#allocation8 + $0x1b0] sm:$0xff]
      %v794 = vld [vmem:[#allocation8 + $0x1b8] sm:$0xff]
      %v795 = vld [vmem:[#allocation8 + $0x1c0] sm:$0xff]
      %v796 = vld [vmem:[#allocation8 + $0x1c8] sm:$0xff]
      %v797 = vld [vmem:[#allocation8 + $0x1d0] sm:$0xff]
      %v798 = vld [vmem:[#allocation8 + $0x1d8] sm:$0xff]
      %v799 = vld [vmem:[#allocation8 + $0x1e0] sm:$0xff]
      %v800 = vld [vmem:[#allocation8 + $0x1e8] sm:$0xff]
      %v801 = vld [vmem:[#allocation8 + $0x1f0] sm:$0xff]
      %v802 = vld [vmem:[#allocation8 + $0x1f8] sm:$0xff]
      %v803 = vsub.f32 %v739, %v738
      %v804 = vsub.f32 %v740, %v738
      %v805 = vsub.f32 %v741, %v738
      %v806 = vsub.f32 %v742, %v738
      %v807 = vsub.f32 %v743, %v738
      %v808 = vsub.f32 %v744, %v738
      %v809 = vsub.f32 %v745, %v738
      %v810 = vsub.f32 %v746, %v738
      %v811 = vsub.f32 %v747, %v738
      %v812 = vsub.f32 %v748, %v738
      %v813 = vsub.f32 %v749, %v738
      %v814 = vsub.f32 %v750, %v738
      %v815 = vsub.f32 %v751, %v738
      %v816 = vsub.f32 %v752, %v738
      %v817 = vsub.f32 %v753, %v738
      %v818 = vsub.f32 %v754, %v738
      %v819 = vsub.f32 %v755, %v738
      %v820 = vsub.f32 %v756, %v738
      %v821 = vsub.f32 %v757, %v738
      %v822 = vsub.f32 %v758, %v738
      %v823 = vsub.f32 %v759, %v738
      %v824 = vsub.f32 %v760, %v738
      %v825 = vsub.f32 %v761, %v738
      %v826 = vsub.f32 %v762, %v738
      %v827 = vsub.f32 %v763, %v738
      %v828 = vsub.f32 %v764, %v738
      %v829 = vsub.f32 %v765, %v738
      %v830 = vsub.f32 %v766, %v738
      %v831 = vsub.f32 %v767, %v738
      %v832 = vsub.f32 %v768, %v738
      %v833 = vsub.f32 %v769, %v738
      %v834 = vsub.f32 %v770, %v738
      %v835 = vsub.f32 %v771, %v738
      %v836 = vsub.f32 %v772, %v738
      %v837 = vsub.f32 %v773, %v738
      %v838 = vsub.f32 %v774, %v738
      %v839 = vsub.f32 %v775, %v738
      %v840 = vsub.f32 %v776, %v738
      %v841 = vsub.f32 %v777, %v738
      %v842 = vsub.f32 %v778, %v738
      %v843 = vsub.f32 %v779, %v738
      %v844 = vsub.f32 %v780, %v738
      %v845 = vsub.f32 %v781, %v738
      %v846 = vsub.f32 %v782, %v738
      %v847 = vsub.f32 %v783, %v738
      %v848 = vsub.f32 %v784, %v738
      %v849 = vsub.f32 %v785, %v738
      %v850 = vsub.f32 %v786, %v738
      %v851 = vsub.f32 %v787, %v738
      %v852 = vsub.f32 %v788, %v738
      %v853 = vsub.f32 %v789, %v738
      %v854 = vsub.f32 %v790, %v738
      %v855 = vsub.f32 %v791, %v738
      %v856 = vsub.f32 %v792, %v738
      %v857 = vsub.f32 %v793, %v738
      %v858 = vsub.f32 %v794, %v738
      %v859 = vsub.f32 %v795, %v738
      %v860 = vsub.f32 %v796, %v738
      %v861 = vsub.f32 %v797, %v738
      %v862 = vsub.f32 %v798, %v738
      %v863 = vsub.f32 %v799, %v738
      %v864 = vsub.f32 %v800, %v738
      %v865 = vsub.f32 %v801, %v738
      %v866 = vsub.f32 %v802, %v738
      %v867 = vmul.f32 %v803, %v803
      %v868 = vmul.f32 %v804, %v804
      %v869 = vmul.f32 %v805, %v805
      %v870 = vmul.f32 %v806, %v806
      %v871 = vmul.f32 %v807, %v807
      %v872 = vmul.f32 %v808, %v808
      %v873 = vmul.f32 %v809, %v809
      %v874 = vmul.f32 %v810, %v810
      %v875 = vmul.f32 %v811, %v811
      %v876 = vmul.f32 %v812, %v812
      %v877 = vmul.f32 %v813, %v813
      %v878 = vmul.f32 %v814, %v814
      %v879 = vmul.f32 %v815, %v815
      %v880 = vmul.f32 %v816, %v816
      %v881 = vmul.f32 %v817, %v817
      %v882 = vmul.f32 %v818, %v818
      %v883 = vmul.f32 %v819, %v819
      %v884 = vmul.f32 %v820, %v820
      %v885 = vmul.f32 %v821, %v821
      %v886 = vmul.f32 %v822, %v822
      %v887 = vmul.f32 %v823, %v823
      %v888 = vmul.f32 %v824, %v824
      %v889 = vmul.f32 %v825, %v825
      %v890 = vmul.f32 %v826, %v826
      %v891 = vmul.f32 %v827, %v827
      %v892 = vmul.f32 %v828, %v828
      %v893 = vmul.f32 %v829, %v829
      %v894 = vmul.f32 %v830, %v830
      %v895 = vmul.f32 %v831, %v831
      %v896 = vmul.f32 %v832, %v832
      %v897 = vmul.f32 %v833, %v833
      %v898 = vmul.f32 %v834, %v834
      %v899 = vmul.f32 %v835, %v835
      %v900 = vmul.f32 %v836, %v836
      %v901 = vmul.f32 %v837, %v837
      %v902 = vmul.f32 %v838, %v838
      %v903 = vmul.f32 %v839, %v839
      %v904 = vmul.f32 %v840, %v840
      %v905 = vmul.f32 %v841, %v841
      %v906 = vmul.f32 %v842, %v842
      %v907 = vmul.f32 %v843, %v843
      %v908 = vmul.f32 %v844, %v844
      %v909 = vmul.f32 %v845, %v845
      %v910 = vmul.f32 %v846, %v846
      %v911 = vmul.f32 %v847, %v847
      %v912 = vmul.f32 %v848, %v848
      %v913 = vmul.f32 %v849, %v849
      %v914 = vmul.f32 %v850, %v850
      %v915 = vmul.f32 %v851, %v851
      %v916 = vmul.f32 %v852, %v852
      %v917 = vmul.f32 %v853, %v853
      %v918 = vmul.f32 %v854, %v854
      %v919 = vmul.f32 %v855, %v855
      %v920 = vmul.f32 %v856, %v856
      %v921 = vmul.f32 %v857, %v857
      %v922 = vmul.f32 %v858, %v858
      %v923 = vmul.f32 %v859, %v859
      %v924 = vmul.f32 %v860, %v860
      %v925 = vmul.f32 %v861, %v861
      %v926 = vmul.f32 %v862, %v862
      %v927 = vmul.f32 %v863, %v863
      %v928 = vmul.f32 %v864, %v864
      %v929 = vmul.f32 %v865, %v865
      %v930 = vmul.f32 %v866, %v866
      %v931 = vadd.f32 %v867, %v868
      %v932 = vadd.f32 %v931, %v869
      %v933 = vadd.f32 %v932, %v870
      %v934 = vadd.f32 %v933, %v871
      %v935 = vadd.f32 %v934, %v872
      %v936 = vadd.f32 %v935, %v873
      %v937 = vadd.f32 %v936, %v874
      %v938 = vadd.f32 %v937, %v875
      %v939 = vadd.f32 %v938, %v876
      %v940 = vadd.f32 %v939, %v877
      %v941 = vadd.f32 %v940, %v878
      %v942 = vadd.f32 %v941, %v879
      %v943 = vadd.f32 %v942, %v880
      %v944 = vadd.f32 %v943, %v881
      %v945 = vadd.f32 %v944, %v882
      %v946 = vadd.f32 %v945, %v883
      %v947 = vadd.f32 %v946, %v884
      %v948 = vadd.f32 %v947, %v885
      %v949 = vadd.f32 %v948, %v886
      %v950 = vadd.f32 %v949, %v887
      %v951 = vadd.f32 %v950, %v888
      %v952 = vadd.f32 %v951, %v889
      %v953 = vadd.f32 %v952, %v890
      %v954 = vadd.f32 %v953, %v891
      %v955 = vadd.f32 %v954, %v892
      %v956 = vadd.f32 %v955, %v893
      %v957 = vadd.f32 %v956, %v894
      %v958 = vadd.f32 %v957, %v895
      %v959 = vadd.f32 %v958, %v896
      %v960 = vadd.f32 %v959, %v897
      %v961 = vadd.f32 %v960, %v898
      %v962 = vadd.f32 %v961, %v899
      %v963 = vadd.f32 %v962, %v900
      %v964 = vadd.f32 %v963, %v901
      %v965 = vadd.f32 %v964, %v902
      %v966 = vadd.f32 %v965, %v903
      %v967 = vadd.f32 %v966, %v904
      %v968 = vadd.f32 %v967, %v905
      %v969 = vadd.f32 %v968, %v906
      %v970 = vadd.f32 %v969, %v907
      %v971 = vadd.f32 %v970, %v908
      %v972 = vadd.f32 %v971, %v909
      %v973 = vadd.f32 %v972, %v910
      %v974 = vadd.f32 %v973, %v911
      %v975 = vadd.f32 %v974, %v912
      %v976 = vadd.f32 %v975, %v913
      %v977 = vadd.f32 %v976, %v914
      %v978 = vadd.f32 %v977, %v915
      %v979 = vadd.f32 %v978, %v916
      %v980 = vadd.f32 %v979, %v917
      %v981 = vadd.f32 %v980, %v918
      %v982 = vadd.f32 %v981, %v919
      %v983 = vadd.f32 %v982, %v920
      %v984 = vadd.f32 %v983, %v921
      %v985 = vadd.f32 %v984, %v922
      %v986 = vadd.f32 %v985, %v923
      %v987 = vadd.f32 %v986, %v924
      %v988 = vadd.f32 %v987, %v925
      %v989 = vadd.f32 %v988, %v926
      %v990 = vadd.f32 %v989, %v927
      %v991 = vadd.f32 %v990, %v928
      %v992 = vadd.f32 %v991, %v929
      %v993 = vadd.f32 %v992, %v930
      %v994 = vrot.slane %v993, 4
      %v995 = vadd.f32 %v993, %v994
      %v996 = vrot.slane %v995, 2
      %v997 = vadd.f32 %v995, %v996
      %v998 = vrot.slane %v997, 1
      %v999 = vadd.f32 %v997, %v998
      %v1000 = vadd.f32 %v999, 0.0
      %v1001 = vmul.f32 %v738, %v738
      %v1002 = vmul.f32 %v1001, 0.0
      %v1003 = vsub.f32 %v1000, %v1002
      %v1004 = vmul.f32 %v1003, 0.001953125
      %v1005 = vld [vmem:[%s2] sm:$0x1]
      %v1006 = vadd.f32 %v1004, 1e-05
      %v1007 = vrsqrt.pop %v1006
      %v1008 = vmul.f32 %v1005, %v1007
      %v1009 = vld [vmem:[%s3] sm:$0x1]
      %v1010 = vmul.f32 %v738, %v1008
      %v1011 = vsub.f32 %v1009, %v1010
      %v1013 = vlaneseq
      %v1014 = vshrl.u32 %v1013, 7
      %v1015 = vsub.s32 0, %v1014
      %v1016 = vrot.slane %v1008, %v1015
      %v1018 = vmul.f32 %v739, %v1016
      %v1019 = vmul.f32 %v740, %v1016
      %v1020 = vmul.f32 %v741, %v1016
      %v1021 = vmul.f32 %v742, %v1016
      %v1022 = vmul.f32 %v743, %v1016
      %v1023 = vmul.f32 %v744, %v1016
      %v1024 = vmul.f32 %v745, %v1016
      %v1025 = vmul.f32 %v746, %v1016
      %v1026 = vmul.f32 %v747, %v1016
      %v1027 = vmul.f32 %v748, %v1016
      %v1028 = vmul.f32 %v749, %v1016
      %v1029 = vmul.f32 %v750, %v1016
      %v1030 = vmul.f32 %v751, %v1016
      %v1031 = vmul.f32 %v752, %v1016
      %v1032 = vmul.f32 %v753, %v1016
      %v1033 = vmul.f32 %v754, %v1016
      %v1034 = vmul.f32 %v755, %v1016
      %v1035 = vmul.f32 %v756, %v1016
      %v1036 = vmul.f32 %v757, %v1016
      %v1037 = vmul.f32 %v758, %v1016
      %v1038 = vmul.f32 %v759, %v1016
      %v1039 = vmul.f32 %v760, %v1016
      %v1040 = vmul.f32 %v761, %v1016
      %v1041 = vmul.f32 %v762, %v1016
      %v1042 = vmul.f32 %v763, %v1016
      %v1043 = vmul.f32 %v764, %v1016
      %v1044 = vmul.f32 %v765, %v1016
      %v1045 = vmul.f32 %v766, %v1016
      %v1046 = vmul.f32 %v767, %v1016
      %v1047 = vmul.f32 %v768, %v1016
      %v1048 = vmul.f32 %v769, %v1016
      %v1049 = vmul.f32 %v770, %v1016
      %v1050 = vmul.f32 %v771, %v1016
      %v1051 = vmul.f32 %v772, %v1016
      %v1052 = vmul.f32 %v773, %v1016
      %v1053 = vmul.f32 %v774, %v1016
      %v1054 = vmul.f32 %v775, %v1016
      %v1055 = vmul.f32 %v776, %v1016
      %v1056 = vmul.f32 %v777, %v1016
      %v1057 = vmul.f32 %v778, %v1016
      %v1058 = vmul.f32 %v779, %v1016
      %v1059 = vmul.f32 %v780, %v1016
      %v1060 = vmul.f32 %v781, %v1016
      %v1061 = vmul.f32 %v782, %v1016
      %v1062 = vmul.f32 %v783, %v1016
      %v1063 = vmul.f32 %v784, %v1016
      %v1064 = vmul.f32 %v785, %v1016
      %v1065 = vmul.f32 %v786, %v1016
      %v1066 = vmul.f32 %v787, %v1016
      %v1067 = vmul.f32 %v788, %v1016
      %v1068 = vmul.f32 %v789, %v1016
      %v1069 = vmul.f32 %v790, %v1016
      %v1070 = vmul.f32 %v791, %v1016
      %v1071 = vmul.f32 %v792, %v1016
      %v1072 = vmul.f32 %v793, %v1016
      %v1073 = vmul.f32 %v794, %v1016
      %v1074 = vmul.f32 %v795, %v1016
      %v1075 = vmul.f32 %v796, %v1016
      %v1076 = vmul.f32 %v797, %v1016
      %v1077 = vmul.f32 %v798, %v1016
      %v1078 = vmul.f32 %v799, %v1016
      %v1079 = vmul.f32 %v800, %v1016
      %v1080 = vmul.f32 %v801, %v1016
      %v1081 = vmul.f32 %v802, %v1016
      %v1083 = vlaneseq
      %v1084 = vshrl.u32 %v1083, 7
      %v1085 = vsub.s32 0, %v1084
      %v1086 = vrot.slane %v1011, %v1085
      %v1088 = vadd.f32 %v1018, %v1086
      %v1089 = vadd.f32 %v1019, %v1086
      %v1090 = vadd.f32 %v1020, %v1086
      %v1091 = vadd.f32 %v1021, %v1086
      %v1092 = vadd.f32 %v1022, %v1086
      %v1093 = vadd.f32 %v1023, %v1086
      %v1094 = vadd.f32 %v1024, %v1086
      %v1095 = vadd.f32 %v1025, %v1086
      %v1096 = vadd.f32 %v1026, %v1086
      %v1097 = vadd.f32 %v1027, %v1086
      %v1098 = vadd.f32 %v1028, %v1086
      %v1099 = vadd.f32 %v1029, %v1086
      %v1100 = vadd.f32 %v1030, %v1086
      %v1101 = vadd.f32 %v1031, %v1086
      %v1102 = vadd.f32 %v1032, %v1086
      %v1103 = vadd.f32 %v1033, %v1086
      %v1104 = vadd.f32 %v1034, %v1086
      %v1105 = vadd.f32 %v1035, %v1086
      %v1106 = vadd.f32 %v1036, %v1086
      %v1107 = vadd.f32 %v1037, %v1086
      %v1108 = vadd.f32 %v1038, %v1086
      %v1109 = vadd.f32 %v1039, %v1086
      %v1110 = vadd.f32 %v1040, %v1086
      %v1111 = vadd.f32 %v1041, %v1086
      %v1112 = vadd.f32 %v1042, %v1086
      %v1113 = vadd.f32 %v1043, %v1086
      %v1114 = vadd.f32 %v1044, %v1086
      %v1115 = vadd.f32 %v1045, %v1086
      %v1116 = vadd.f32 %v1046, %v1086
      %v1117 = vadd.f32 %v1047, %v1086
      %v1118 = vadd.f32 %v1048, %v1086
      %v1119 = vadd.f32 %v1049, %v1086
      %v1120 = vadd.f32 %v1050, %v1086
      %v1121 = vadd.f32 %v1051, %v1086
      %v1122 = vadd.f32 %v1052, %v1086
      %v1123 = vadd.f32 %v1053, %v1086
      %v1124 = vadd.f32 %v1054, %v1086
      %v1125 = vadd.f32 %v1055, %v1086
      %v1126 = vadd.f32 %v1056, %v1086
      %v1127 = vadd.f32 %v1057, %v1086
      %v1128 = vadd.f32 %v1058, %v1086
      %v1129 = vadd.f32 %v1059, %v1086
      %v1130 = vadd.f32 %v1060, %v1086
      %v1131 = vadd.f32 %v1061, %v1086
      %v1132 = vadd.f32 %v1062, %v1086
      %v1133 = vadd.f32 %v1063, %v1086
      %v1134 = vadd.f32 %v1064, %v1086
      %v1135 = vadd.f32 %v1065, %v1086
      %v1136 = vadd.f32 %v1066, %v1086
      %v1137 = vadd.f32 %v1067, %v1086
      %v1138 = vadd.f32 %v1068, %v1086
      %v1139 = vadd.f32 %v1069, %v1086
      %v1140 = vadd.f32 %v1070, %v1086
      %v1141 = vadd.f32 %v1071, %v1086
      %v1142 = vadd.f32 %v1072, %v1086
      %v1143 = vadd.f32 %v1073, %v1086
      %v1144 = vadd.f32 %v1074, %v1086
      %v1145 = vadd.f32 %v1075, %v1086
      %v1146 = vadd.f32 %v1076, %v1086
      %v1147 = vadd.f32 %v1077, %v1086
      %v1148 = vadd.f32 %v1078, %v1086
      %v1149 = vadd.f32 %v1079, %v1086
      %v1150 = vadd.f32 %v1080, %v1086
      %v1151 = vadd.f32 %v1081, %v1086
      %1152 = vst [vmem:[#allocation8] sm:$0xff] %v1088
      %1153 = vst [vmem:[#allocation8 + $0x8] sm:$0xff] %v1089
      %1154 = vst [vmem:[#allocation8 + $0x10] sm:$0xff] %v1090
      %1155 = vst [vmem:[#allocation8 + $0x18] sm:$0xff] %v1091
      %1156 = vst [vmem:[#allocation8 + $0x20] sm:$0xff] %v1092
      %1157 = vst [vmem:[#allocation8 + $0x28] sm:$0xff] %v1093
      %1158 = vst [vmem:[#allocation8 + $0x30] sm:$0xff] %v1094
      %1159 = vst [vmem:[#allocation8 + $0x38] sm:$0xff] %v1095
      %1160 = vst [vmem:[#allocation8 + $0x40] sm:$0xff] %v1096
      %1161 = vst [vmem:[#allocation8 + $0x48] sm:$0xff] %v1097
      %1162 = vst [vmem:[#allocation8 + $0x50] sm:$0xff] %v1098
      %1163 = vst [vmem:[#allocation8 + $0x58] sm:$0xff] %v1099
      %1164 = vst [vmem:[#allocation8 + $0x60] sm:$0xff] %v1100
      %1165 = vst [vmem:[#allocation8 + $0x68] sm:$0xff] %v1101
      %1166 = vst [vmem:[#allocation8 + $0x70] sm:$0xff] %v1102
      %1167 = vst [vmem:[#allocation8 + $0x78] sm:$0xff] %v1103
      %1168 = vst [vmem:[#allocation8 + $0x80] sm:$0xff] %v1104
      %1169 = vst [vmem:[#allocation8 + $0x88] sm:$0xff] %v1105
      %1170 = vst [vmem:[#allocation8 + $0x90] sm:$0xff] %v1106
      %1171 = vst [vmem:[#allocation8 + $0x98] sm:$0xff] %v1107
      %1172 = vst [vmem:[#allocation8 + $0xa0] sm:$0xff] %v1108
      %1173 = vst [vmem:[#allocation8 + $0xa8] sm:$0xff] %v1109
      %1174 = vst [vmem:[#allocation8 + $0xb0] sm:$0xff] %v1110
      %1175 = vst [vmem:[#allocation8 + $0xb8] sm:$0xff] %v1111
      %1176 = vst [vmem:[#allocation8 + $0xc0] sm:$0xff] %v1112
      %1177 = vst [vmem:[#allocation8 + $0xc8] sm:$0xff] %v1113
      %1178 = vst [vmem:[#allocation8 + $0xd0] sm:$0xff] %v1114
      %1179 = vst [vmem:[#allocation8 + $0xd8] sm:$0xff] %v1115
      %1180 = vst [vmem:[#allocation8 + $0xe0] sm:$0xff] %v1116
      %1181 = vst [vmem:[#allocation8 + $0xe8] sm:$0xff] %v1117
      %1182 = vst [vmem:[#allocation8 + $0xf0] sm:$0xff] %v1118
      %1183 = vst [vmem:[#allocation8 + $0xf8] sm:$0xff] %v1119
      %1184 = vst [vmem:[#allocation8 + $0x100] sm:$0xff] %v1120
      %1185 = vst [vmem:[#allocation8 + $0x108] sm:$0xff] %v1121
      %1186 = vst [vmem:[#allocation8 + $0x110] sm:$0xff] %v1122
      %1187 = vst [vmem:[#allocation8 + $0x118] sm:$0xff] %v1123
      %1188 = vst [vmem:[#allocation8 + $0x120] sm:$0xff] %v1124
      %1189 = vst [vmem:[#allocation8 + $0x128] sm:$0xff] %v1125
      %1190 = vst [vmem:[#allocation8 + $0x130] sm:$0xff] %v1126
      %1191 = vst [vmem:[#allocation8 + $0x138] sm:$0xff] %v1127
      %1192 = vst [vmem:[#allocation8 + $0x140] sm:$0xff] %v1128
      %1193 = vst [vmem:[#allocation8 + $0x148] sm:$0xff] %v1129
      %1194 = vst [vmem:[#allocation8 + $0x150] sm:$0xff] %v1130
      %1195 = vst [vmem:[#allocation8 + $0x158] sm:$0xff] %v1131
      %1196 = vst [vmem:[#allocation8 + $0x160] sm:$0xff] %v1132
      %1197 = vst [vmem:[#allocation8 + $0x168] sm:$0xff] %v1133
      %1198 = vst [vmem:[#allocation8 + $0x170] sm:$0xff] %v1134
      %1199 = vst [vmem:[#allocation8 + $0x178] sm:$0xff] %v1135
      %1200 = vst [vmem:[#allocation8 + $0x180] sm:$0xff] %v1136
      %1201 = vst [vmem:[#allocation8 + $0x188] sm:$0xff] %v1137
      %1202 = vst [vmem:[#allocation8 + $0x190] sm:$0xff] %v1138
      %1203 = vst [vmem:[#allocation8 + $0x198] sm:$0xff] %v1139
      %1204 = vst [vmem:[#allocation8 + $0x1a0] sm:$0xff] %v1140
      %1205 = vst [vmem:[#allocation8 + $0x1a8] sm:$0xff] %v1141
      %1206 = vst [vmem:[#allocation8 + $0x1b0] sm:$0xff] %v1142
      %1207 = vst [vmem:[#allocation8 + $0x1b8] sm:$0xff] %v1143
      %1208 = vst [vmem:[#allocation8 + $0x1c0] sm:$0xff] %v1144
      %1209 = vst [vmem:[#allocation8 + $0x1c8] sm:$0xff] %v1145
      %1210 = vst [vmem:[#allocation8 + $0x1d0] sm:$0xff] %v1146
      %1211 = vst [vmem:[#allocation8 + $0x1d8] sm:$0xff] %v1147
      %1212 = vst [vmem:[#allocation8 + $0x1e0] sm:$0xff] %v1148
      %1213 = vst [vmem:[#allocation8 + $0x1e8] sm:$0xff] %v1149
      %1214 = vst [vmem:[#allocation8 + $0x1f0] sm:$0xff] %v1150
      %1215 = vst [vmem:[#allocation8 + $0x1f8] sm:$0xff] %v1151
    $region33: #{tpu_custom_call.1} parent=1 // pred_fallthru
      _
    // Predicated region
    $region34: #{tpu_custom_call.1} parent=1 // pred_check
      _
    $region35: #{tpu_custom_call.1} parent=1 // pred_check_branch
      %1217 = sbr.rel (0) target = $region37
    $region36: #{tpu_custom_call.1} parent=1 // pred_region
      %s1219 = ssub.s32 8192, 8192
      %1220 = vsyncadd [#allocation5], %s1219
      %s1221 = sshll.u32 [#allocation8], 4
      %s1222 = int_to_ptr.vmem [resolvable:$true] %s1221
      %1227 = dma.vmem_to_hbm [thread:$0]  %s1222, 8192, %s4, [#allocation5], 128, 128, 8
    $region37: #{tpu_custom_call.1} parent=1 // pred_fallthru
      _
    // Predicated region
    $region38: #{tpu_custom_call.1} parent=1 // pred_check
      _
    $region39: #{tpu_custom_call.1} parent=1 // pred_check_branch
      %1229 = sbr.rel (0) target = $region41
    $region40: #{tpu_custom_call.1} parent=1 // pred_region
      %1230 = dma.done [#allocation5], 8192
    $region41: #{tpu_custom_call.1} parent=1 // pred_fallthru
      _
    %1231 = vsyncpa [#allocation4], 1
    %1232 = vsyncpa [#allocation7], 1
    %1233 = vsyncpa [#allocation5], 1

</llo_original>
